<compile_context>
chip_gen: v5e
topology: v5e:2x2
jax: 0.10.0
libtpu: 0.0.40
codegen_flags: <defaults>
</compile_context>

<pallas_src>
import math
from functools import partial

import jax
import jax.numpy as jnp
from jax.experimental import pallas as pl
from jax.experimental.pallas import tpu as pltpu

_NEG_INF = -1e30   # finite mask value: avoids (-inf) - (-inf) = NaN corner cases
_BF16 = jnp.bfloat16


def _layernorm(x, gamma, beta, eps=1e-5):
    mu = jnp.mean(x, axis=-1, keepdims=True)
    var = jnp.mean((x - mu) ** 2, axis=-1, keepdims=True)
    return (x - mu) * jax.lax.rsqrt(var + eps) * gamma + beta


def _const_spec(shape, grid_rank, single_buffer):
    """BlockSpec for a fully-resident weight (constant block index).

    With single_buffer=True we request 1-deep buffering (the block never changes, so
    double-buffering only wastes VMEM); falls back to the default spec if this Pallas
    build has no pipeline_mode kwarg.
    """
    zeros = (0,) * len(shape)
    if grid_rank == 2:
        index_map = lambda a, b: zeros
    else:
        index_map = lambda a, b, c: zeros
    if single_buffer:
        try:
            return pl.BlockSpec(shape, index_map, pipeline_mode=pl.Buffered(1))
        except TypeError:   # older Pallas: no pipeline_mode on BlockSpec
            pass
    return pl.BlockSpec(shape, index_map)


# -------------------------------------------------------------------------------------
# Kernel 1: ln_attn (non-PPE) + Q/K/V projections, once per token, head-major bf16 out
# -------------------------------------------------------------------------------------
def _qkv_proj_kernel(*args, n_head, d_attn, scale, use_ppe):
    if use_ppe:
        (p_ref, e_ref, wq_ref, wk_ref, wv_ref, bqkv_ref,
         q_out, k_out, v_out) = args
        qk_in = p_ref[0].astype(_BF16)          # PyTorch PPE branch ignores ln_attn(x)
        v_in = e_ref[0].astype(_BF16)
    else:
        (x_ref, lna_ref, wq_ref, wk_ref, wv_ref, bqkv_ref,
         q_out, k_out, v_out) = args
        src = _layernorm(x_ref[0], lna_ref[0:1], lna_ref[1:2]).astype(_BF16)
        qk_in = v_in = src

    q_all = (jnp.dot(qk_in, wq_ref[...], preferred_element_type=jnp.float32)
             + bqkv_ref[0:1]) * scale           # 1/sqrt(d_attn) folded into q once
    k_all = jnp.dot(qk_in, wk_ref[...], preferred_element_type=jnp.float32) + bqkv_ref[1:2]
    v_all = jnp.dot(v_in, wv_ref[...], preferred_element_type=jnp.float32) + bqkv_ref[2:3]

    for h in range(n_head):                     # head-major layout for the flash kernel
        lo, hi = h * d_attn, (h + 1) * d_attn
        q_out[0, h] = q_all[:, lo:hi].astype(_BF16)
        k_out[0, h] = k_all[:, lo:hi].astype(_BF16)
        v_out[0, h] = v_all[:, lo:hi].astype(_BF16)


def _qkv_proj(x, e, p, wq, wk, wv, bqkv, lna, *, n_head, d_attn, use_ppe,
              tile_s, single_buffer, vmem_limit):
    B, S, D = x.shape
    scale = 1.0 / math.sqrt(d_attn)

    def act_spec():
        return pl.BlockSpec((1, tile_s, D), lambda b, s: (b, s, 0))

    if use_ppe:
        acts, act_specs = [p, e], [act_spec(), act_spec()]
        weights = [wq, wk, wv, bqkv]
    else:
        acts, act_specs = [x], [act_spec()]
        weights = [lna, wq, wk, wv, bqkv]       # ln_attn params only needed here

    def out_spec():
        return pl.BlockSpec((1, n_head, tile_s, d_attn), lambda b, s: (b, 0, s, 0))

    kernel = partial(_qkv_proj_kernel, n_head=n_head, d_attn=d_attn,
                     scale=scale, use_ppe=use_ppe)
    return pl.pallas_call(
        kernel,
        out_shape=tuple(jax.ShapeDtypeStruct((B, n_head, S, d_attn), _BF16)
                        for _ in range(3)),
        grid=(B, S // tile_s),
        in_specs=act_specs + [_const_spec(w.shape, 2, single_buffer) for w in weights],
        out_specs=(out_spec(), out_spec(), out_spec()),
        compiler_params=pltpu.CompilerParams(
            dimension_semantics=("parallel", "parallel"),
            vmem_limit_bytes=vmem_limit),
    )(*acts, *weights)


# -------------------------------------------------------------------------------------
# Kernel 2: flash attention over pre-projected Q/K/V + fused output projection
# -------------------------------------------------------------------------------------
def _flash_attn_kernel(x_ref, q_ref, k_ref, v_ref, wo_ref, bo_ref, o_ref,
                       m_scr, l_scr, acc_scr, y_scr, *, n_head, d_attn, tq, tk):
    qi = pl.program_id(1)
    kv = pl.program_id(2)
    n_kv = pl.num_programs(2)

    @pl.when(kv == 0)
    def _():
        m_scr[...] = jnp.full(m_scr.shape, _NEG_INF, m_scr.dtype)
        l_scr[...] = jnp.zeros(l_scr.shape, l_scr.dtype)
        acc_scr[...] = jnp.zeros(acc_scr.shape, acc_scr.dtype)

    @pl.when(kv * tk < (qi + 1) * tq)           # skip tiles fully above the diagonal
    def _():
        row = qi * tq + jax.lax.broadcasted_iota(jnp.int32, (tq, tk), 0)
        col = kv * tk + jax.lax.broadcasted_iota(jnp.int32, (tq, tk), 1)
        causal = col <= row
        for h in range(n_head):                 # static unroll; state lives in VMEM scratch
            qh = q_ref[0, h]                    # (tq, da) bf16, pre-scaled
            kh = k_ref[0, h]                    # (tk, da) bf16
            vh = v_ref[0, h]                    # (tk, da) bf16
            # QK^T via transposed contraction -- no explicit .T / XLU transpose
            s = jax.lax.dot_general(qh, kh, (((1,), (1,)), ((), ())),
                                    preferred_element_type=jnp.float32)
            s = jnp.where(causal, s, _NEG_INF)
            m_old = m_scr[h]
            m_new = jnp.maximum(m_old, jnp.max(s, axis=-1, keepdims=True))
            alpha = jnp.exp(m_old - m_new)
            pr = jnp.exp(s - m_new)
            l_scr[h] = alpha * l_scr[h] + jnp.sum(pr, axis=-1, keepdims=True)
            acc_scr[h] = alpha * acc_scr[h] + jnp.dot(pr.astype(_BF16), vh,
                                                      preferred_element_type=jnp.float32)
            m_scr[h] = m_new

    @pl.when(kv == n_kv - 1)
    def _():
        # normalize into a (tq, H) bf16 slab, then ONE fused (tq,H)x(H,D) projection
        for h in range(n_head):
            inv_l = pl.reciprocal(l_scr[h], approx=True)     # EUP slot (~free)
            y_scr[:, h * d_attn:(h + 1) * d_attn] = (acc_scr[h] * inv_l).astype(_BF16)
        attn = jnp.dot(y_scr[...], wo_ref[...], preferred_element_type=jnp.float32)
        # TODO(synk): attn_dropout / resid_dropout omitted (eval mode, p=0).
        o_ref[0] = (x_ref[0] + attn + bo_ref[...]).astype(o_ref.dtype)


def _flash_attention(x, q, k, v, wo, bo, *, n_head, d_attn, tq, tk,
                     single_buffer, vmem_limit):
    B, S, D = x.shape
    H = n_head * d_attn

    def kv_index(b, qi, kvi):
        # Clamp to the last causally-relevant kv tile: fully-masked tiles map to the
        # previously fetched block so Pallas elides their DMA (~halves KV reads).
        last = ((qi + 1) * tq - 1) // tk
        return (b, 0, jnp.minimum(kvi, last), 0)

    kernel = partial(_flash_attn_kernel, n_head=n_head, d_attn=d_attn, tq=tq, tk=tk)
    return pl.pallas_call(
        kernel,
        out_shape=jax.ShapeDtypeStruct((B, S, D), x.dtype),
        grid=(B, S // tq, S // tk),
        in_specs=[
            pl.BlockSpec((1, tq, D), lambda b, qi, kvi: (b, qi, 0)),          # residual x
            pl.BlockSpec((1, n_head, tq, d_attn), lambda b, qi, kvi: (b, 0, qi, 0)),
            pl.BlockSpec((1, n_head, tk, d_attn), kv_index),
            pl.BlockSpec((1, n_head, tk, d_attn), kv_index),
            _const_spec(wo.shape, 3, single_buffer),
            _const_spec(bo.shape, 3, single_buffer),
        ],
        out_specs=pl.BlockSpec((1, tq, D), lambda b, qi, kvi: (b, qi, 0)),
        scratch_shapes=[
            pltpu.VMEM((n_head, tq, 1), jnp.float32),        # running max   m
            pltpu.VMEM((n_head, tq, 1), jnp.float32),        # running sum   l
            pltpu.VMEM((n_head, tq, d_attn), jnp.float32),   # running value acc
            pltpu.VMEM((tq, H), _BF16),                      # normalized heads slab
        ],
        compiler_params=pltpu.CompilerParams(
            dimension_semantics=("parallel", "parallel", "arbitrary"),
            vmem_limit_bytes=vmem_limit),
    )(x, q, k, v, wo, bo)


# -------------------------------------------------------------------------------------
# Kernel 3: ln_mlp + Linear/GELU/Linear + residual, d_ff tiled on a reduction axis
# -------------------------------------------------------------------------------------
def _mlp_kernel(x1_ref, lnb2_ref, w1_ref, b1_ref, w2_ref, o_ref, ln_scr, acc_scr):
    f = pl.program_id(2)

    @pl.when(f == 0)
    def _():
        # lnb2 rows: [lnm_g, lnm_b, b2]
        ln_scr[...] = _layernorm(x1_ref[0], lnb2_ref[0:1], lnb2_ref[1:2]).astype(_BF16)
        acc_scr[...] = jnp.zeros(acc_scr.shape, acc_scr.dtype)

    h1 = jnp.dot(ln_scr[...], w1_ref[...], preferred_element_type=jnp.float32) + b1_ref[...]
    h1 = jax.nn.gelu(h1, approximate=False)      # erf form == torch nn.GELU default
    acc_scr[...] += jnp.dot(h1.astype(_BF16), w2_ref[...],
                            preferred_element_type=jnp.float32)

    @pl.when(f == pl.num_programs(2) - 1)
    def _():
        # TODO(synk): mlp dropout omitted (eval mode, p=0).
        o_ref[0] = (x1_ref[0] + acc_scr[...] + lnb2_ref[2:3]).astype(o_ref.dtype)


def _mlp(x1, lnb2, w1, b1, w2, *, tq, tf, single_buffer, vmem_limit):
    B, S, D = x1.shape
    d_ff = w1.shape[1]
    n_f = d_ff // tf

    if n_f == 1:     # weights fully resident -> constant index, single-buffered
        w1_spec = _const_spec(w1.shape, 3, single_buffer)
        b1_spec = _const_spec(b1.shape, 3, single_buffer)
        w2_spec = _const_spec(w2.shape, 3, single_buffer)
    else:            # stream d_ff tiles on the reduction axis (frees VMEM on v7x)
        w1_spec = pl.BlockSpec((D, tf), lambda b, s, f: (0, f))
        b1_spec = pl.BlockSpec((1, tf), lambda b, s, f: (0, f))
        w2_spec = pl.BlockSpec((tf, D), lambda b, s, f: (f, 0))

    return pl.pallas_call(
        _mlp_kernel,
        out_shape=jax.ShapeDtypeStruct((B, S, D), x1.dtype),
        grid=(B, S // tq, n_f),
        in_specs=[
            pl.BlockSpec((1, tq, D), lambda b, s, f: (b, s, 0)),
            _const_spec(lnb2.shape, 3, single_buffer),
            w1_spec, b1_spec, w2_spec,
        ],
        out_specs=pl.BlockSpec((1, tq, D), lambda b, s, f: (b, s, 0)),
        scratch_shapes=[
            pltpu.VMEM((tq, D), _BF16),          # cached ln_mlp(x1) tile
            pltpu.VMEM((tq, D), jnp.float32),    # d_ff reduction accumulator
        ],
        compiler_params=pltpu.CompilerParams(
            dimension_semantics=("parallel", "parallel", "arbitrary"),
            vmem_limit_bytes=vmem_limit),
    )(x1, lnb2, w1, b1, w2)


# -------------------------------------------------------------------------------------
# Full Block forward
# -------------------------------------------------------------------------------------
def block_forward(x, e, p, params, *, n_head, d_attn, use_ppe,
                  tile_q=None, tile_k=None, tile_proj=None, tile_ff=None,
                  single_buffer_weights=True, vmem_limit_bytes=48 * 1024 * 1024):
    """x + attn(ln_attn(x), e, p), then + mlp(ln_mlp(.)).  use_attn/use_ff assumed True."""
    B, S, D = x.shape
    d_ff = params["w1"].shape[1]

    def pick_seq_tile(requested):
        if requested is not None:
            return requested
        # 256 fills the 256-wide MXU on v6e/v7x; v5e is equally happy at 128.
        for t in (256, 128, 64, 32, 16, 8):
            if t <= S and S % t == 0:
                return t
        return S

    tq = pick_seq_tile(tile_q)
    tk = pick_seq_tile(tile_k)
    ts = pick_seq_tile(tile_proj)

    if tile_ff is not None:
        tf = tile_ff
    elif 2 * D * d_ff * 2 <= 16 * 1024 * 1024:   # bf16 w1+w2 comfortably resident
        tf = d_ff
    else:
        tf = d_ff
        for t in (2048, 1024, 512, 256, 128):
            if d_ff % t == 0:
                tf = t
                break

    assert S % tq == 0 and S % tk == 0 and S % ts == 0, \
        "sequence length must be divisible by the tile sizes"
    assert d_ff % tf == 0 and (tf % 128 == 0 or tf == d_ff), \
        "d_ff tile must be a multiple of 128 (or the full d_ff)"

    bf = _BF16
    # Large matrices in bf16 (MXU inputs, half the HBM/VMEM traffic); small vectors
    # stacked into a few f32 arrays (fewer BlockSpecs / per-step DMA descriptors).
    wq, wk, wv = params["wq"].astype(bf), params["wk"].astype(bf), params["wv"].astype(bf)
    wo, w1, w2 = params["wo"].astype(bf), params["w1"].astype(bf), params["w2"].astype(bf)
    bqkv = jnp.concatenate([params["bq"], params["bk"], params["bv"]], axis=0)        # (3, H)
    lna = jnp.concatenate([params["lna_g"], params["lna_b"]], axis=0)                 # (2, D)
    lnb2 = jnp.concatenate([params["lnm_g"], params["lnm_b"], params["b2"]], axis=0)  # (3, D)

    q, k, v = _qkv_proj(x, e, p, wq, wk, wv, bqkv, lna,
                        n_head=n_head, d_attn=d_attn, use_ppe=use_ppe, tile_s=ts,
                        single_buffer=single_buffer_weights, vmem_limit=vmem_limit_bytes)
    x1 = _flash_attention(x, q, k, v, wo, params["bo"],
                          n_head=n_head, d_attn=d_attn, tq=tq, tk=tk,
                          single_buffer=single_buffer_weights, vmem_limit=vmem_limit_bytes)
    return _mlp(x1, lnb2, w1, params["b1"], w2, tq=tq, tf=tf,
                single_buffer=single_buffer_weights, vmem_limit=vmem_limit_bytes)


def init_params(key, d_embed, n_head, d_attn, d_ff):
    H = n_head * d_attn
    ks = jax.random.split(key, 6)

    def lin(k, fan_in, fan_out):
        bound = 1.0 / math.sqrt(fan_in)
        kw, kb = jax.random.split(k)
        w = jax.random.uniform(kw, (fan_in, fan_out), jnp.float32, -bound, bound)
        b = jax.random.uniform(kb, (1, fan_out), jnp.float32, -bound, bound)
        return w, b

    wq, bq = lin(ks[0], d_embed, H)
    wk, bk = lin(ks[1], d_embed, H)
    wv, bv = lin(ks[2], d_embed, H)
    wo, bo = lin(ks[3], H, d_embed)
    w1, b1 = lin(ks[4], d_embed, d_ff)
    w2, b2 = lin(ks[5], d_ff, d_embed)
    return dict(
        lna_g=jnp.ones((1, d_embed), jnp.float32),
        lna_b=jnp.zeros((1, d_embed), jnp.float32),
        wq=wq, bq=bq, wk=wk, bk=bk, wv=wv, bv=bv, wo=wo, bo=bo,
        lnm_g=jnp.ones((1, d_embed), jnp.float32),
        lnm_b=jnp.zeros((1, d_embed), jnp.float32),
        w1=w1, b1=b1, w2=w2, b2=b2,
    )


def ref_block(x, e, p, params, *, n_head, d_attn, use_ppe):
    """Pure-JAX f32 reference mirroring the PyTorch forward (eval mode)."""
    B, S, D = x.shape

    def ln(z, g, b):
        mu = jnp.mean(z, axis=-1, keepdims=True)
        var = jnp.mean((z - mu) ** 2, axis=-1, keepdims=True)
        return (z - mu) / jnp.sqrt(var + 1e-5) * g[0] + b[0]

    ln_x = ln(x, params["lna_g"], params["lna_b"])
    q_in, k_in, v_in = (p, p, e) if use_ppe else (ln_x, ln_x, ln_x)
    q = q_in @ params["wq"] + params["bq"][0]
    k = k_in @ params["wk"] + params["bk"][0]
    v = v_in @ params["wv"] + params["bv"][0]
    q = q.reshape(B, S, n_head, d_attn).transpose(0, 2, 1, 3)
    k = k.reshape(B, S, n_head, d_attn).transpose(0, 2, 1, 3)
    v = v.reshape(B, S, n_head, d_attn).transpose(0, 2, 1, 3)
    s = jnp.einsum("bhqd,bhkd->bhqk", q, k) / math.sqrt(d_attn)
    mask = jnp.tril(jnp.ones((S, S), bool))
    s = jnp.where(mask, s, -jnp.inf)
    a = jax.nn.softmax(s, axis=-1)
    y = jnp.einsum("bhqk,bhkd->bhqd", a, v).transpose(0, 2, 1, 3).reshape(B, S, -1)
    x1 = x + (y @ params["wo"] + params["bo"][0])
    ln2 = ln(x1, params["lnm_g"], params["lnm_b"])
    h1 = jax.nn.gelu(ln2 @ params["w1"] + params["b1"][0], approximate=False)
    return x1 + (h1 @ params["w2"] + params["b2"][0])


if __name__ == "__main__":
    B, S, D = 2, 32, 32
    n_head, d_attn, d_ff = 2, 8, 256
    tq = tk = 16   # multiple kv tiles -> flash path + causal DMA-skip exercised
    tf = 128       # two d_ff reduction steps -> MLP accumulator path exercised

    key = jax.random.PRNGKey(0)
    kx, ke, kp, kw = jax.random.split(key, 4)
    x = jax.random.normal(kx, (B, S, D), jnp.float32)
    e = jax.random.normal(ke, (B, S, D), jnp.float32)
    p = jax.random.normal(kp, (B, S, D), jnp.float32)
    params = init_params(kw, D, n_head, d_attn, d_ff)

    for use_ppe in (True, False):
        ref = ref_block(x, e, p, params, n_head=n_head, d_attn=d_attn, use_ppe=use_ppe)

        def run_and_check(single_buffer):
            out = block_forward(x, e, p, params, n_head=n_head, d_attn=d_attn,
                                use_ppe=use_ppe, tile_q=tq, tile_k=tk, tile_ff=tf,
                                single_buffer_weights=single_buffer)
            out = jax.block_until_ready(out)
            assert out.shape == (B, S, D)
            # bf16 MXU operands (intentional) -> looser tolerance vs the f32 reference.
            assert jnp.allclose(out, ref, atol=5e-2, rtol=5e-2), (
                f"mismatch vs JAX reference (use_ppe={use_ppe}), "
                f"max|err|={float(jnp.max(jnp.abs(out - ref)))}")

        try:
            run_and_check(True)
        except Exception:
            # pl.Buffered(1) not supported on this Pallas build -> default buffering.
            run_and_check(False)

    print("KERNEL_OK")
</pallas_src>

<mosaic_0001>
module attributes {stable_mosaic.version = 11 : i64} {
  func.func @_qkv_proj_kernel(%arg0: i32, %arg1: i32, %arg2: memref<1x32x32xf32, #tpu.memory_space<vmem>>, %arg3: memref<1x32x32xf32, #tpu.memory_space<vmem>>, %arg4: memref<32x16xbf16, #tpu.memory_space<vmem>>, %arg5: memref<32x16xbf16, #tpu.memory_space<vmem>>, %arg6: memref<32x16xbf16, #tpu.memory_space<vmem>>, %arg7: memref<3x16xf32, #tpu.memory_space<vmem>>, %arg8: memref<1x2x32x8xbf16, #tpu.memory_space<vmem>>, %arg9: memref<1x2x32x8xbf16, #tpu.memory_space<vmem>>, %arg10: memref<1x2x32x8xbf16, #tpu.memory_space<vmem>>) attributes {dimension_semantics = [#tpu.dimension_semantics<parallel>, #tpu.dimension_semantics<parallel>], iteration_bounds = array<i64: 2, 1>, scalar_prefetch = 0 : i64, scratch_operands = 0 : i64, tpu.core_type = #tpu.core_type<tc>, window_params = [{transform_indices = @transform_0, window_bounds = array<i64: 1, 32, 32>}, {transform_indices = @transform_1, window_bounds = array<i64: 1, 32, 32>}, {pipeline_mode = #tpu.pipeline_mode<synchronous>, transform_indices = @transform_2, window_bounds = array<i64: 32, 16>}, {pipeline_mode = #tpu.pipeline_mode<synchronous>, transform_indices = @transform_3, window_bounds = array<i64: 32, 16>}, {pipeline_mode = #tpu.pipeline_mode<synchronous>, transform_indices = @transform_4, window_bounds = array<i64: 32, 16>}, {pipeline_mode = #tpu.pipeline_mode<synchronous>, transform_indices = @transform_5, window_bounds = array<i64: 3, 16>}, {transform_indices = @transform_6, window_bounds = array<i64: 1, 2, 32, 8>}, {transform_indices = @transform_7, window_bounds = array<i64: 1, 2, 32, 8>}, {transform_indices = @transform_8, window_bounds = array<i64: 1, 2, 32, 8>}]} {
    %c0 = arith.constant 0 : index
    %c0_0 = arith.constant 0 : index
    %c0_1 = arith.constant 0 : index
    %0 = vector.load %arg2[%c0, %c0_0, %c0_1] : memref<1x32x32xf32, #tpu.memory_space<vmem>>, vector<1x32x32xf32>
    %1 = vector.shape_cast %0 : vector<1x32x32xf32> to vector<32x32xf32>
    %2 = arith.truncf %1 : vector<32x32xf32> to vector<32x32xbf16>
    %c0_2 = arith.constant 0 : index
    %c0_3 = arith.constant 0 : index
    %c0_4 = arith.constant 0 : index
    %3 = vector.load %arg3[%c0_2, %c0_3, %c0_4] : memref<1x32x32xf32, #tpu.memory_space<vmem>>, vector<1x32x32xf32>
    %4 = vector.shape_cast %3 : vector<1x32x32xf32> to vector<32x32xf32>
    %5 = arith.truncf %4 : vector<32x32xf32> to vector<32x32xbf16>
    %c0_5 = arith.constant 0 : index
    %c0_6 = arith.constant 0 : index
    %6 = vector.load %arg4[%c0_5, %c0_6] : memref<32x16xbf16, #tpu.memory_space<vmem>>, vector<32x16xbf16>
    %cst = arith.constant dense<0.000000e+00> : vector<32x16xf32>
    %7 = tpu.matmul %2, %6, %cst {dimension_numbers = #tpu.dot_dimension_numbers<[1], [0], [0], [1], [0, 0, 1, 1], [], []>} : vector<32x32xbf16>, vector<32x16xbf16>, vector<32x16xf32> -> vector<32x16xf32>
    %c0_7 = arith.constant 0 : index
    %c0_8 = arith.constant 0 : index
    %8 = vector.load %arg7[%c0_7, %c0_8] : memref<3x16xf32, #tpu.memory_space<vmem>>, vector<1x16xf32>
    %9 = vector.broadcast %8 : vector<1x16xf32> to vector<32x16xf32>
    %10 = arith.addf %7, %9 : vector<32x16xf32>
    %cst_9 = arith.constant 0.353553385 : f32
    %11 = vector.broadcast %cst_9 : f32 to vector<32x16xf32>
    %12 = arith.mulf %10, %11 : vector<32x16xf32>
    %c0_10 = arith.constant 0 : index
    %c0_11 = arith.constant 0 : index
    %13 = vector.load %arg5[%c0_10, %c0_11] : memref<32x16xbf16, #tpu.memory_space<vmem>>, vector<32x16xbf16>
    %cst_12 = arith.constant dense<0.000000e+00> : vector<32x16xf32>
    %14 = tpu.matmul %2, %13, %cst_12 {dimension_numbers = #tpu.dot_dimension_numbers<[1], [0], [0], [1], [0, 0, 1, 1], [], []>} : vector<32x32xbf16>, vector<32x16xbf16>, vector<32x16xf32> -> vector<32x16xf32>
    %c1 = arith.constant 1 : index
    %c0_13 = arith.constant 0 : index
    %15 = vector.load %arg7[%c1, %c0_13] : memref<3x16xf32, #tpu.memory_space<vmem>>, vector<1x16xf32>
    %16 = vector.broadcast %15 : vector<1x16xf32> to vector<32x16xf32>
    %17 = arith.addf %14, %16 : vector<32x16xf32>
    %c0_14 = arith.constant 0 : index
    %c0_15 = arith.constant 0 : index
    %18 = vector.load %arg6[%c0_14, %c0_15] : memref<32x16xbf16, #tpu.memory_space<vmem>>, vector<32x16xbf16>
    %cst_16 = arith.constant dense<0.000000e+00> : vector<32x16xf32>
    %19 = tpu.matmul %5, %18, %cst_16 {dimension_numbers = #tpu.dot_dimension_numbers<[1], [0], [0], [1], [0, 0, 1, 1], [], []>} : vector<32x32xbf16>, vector<32x16xbf16>, vector<32x16xf32> -> vector<32x16xf32>
    %c2 = arith.constant 2 : index
    %c0_17 = arith.constant 0 : index
    %20 = vector.load %arg7[%c2, %c0_17] : memref<3x16xf32, #tpu.memory_space<vmem>>, vector<1x16xf32>
    %21 = vector.broadcast %20 : vector<1x16xf32> to vector<32x16xf32>
    %22 = arith.addf %19, %21 : vector<32x16xf32>
    %23 = vector.extract_strided_slice %12 {offsets = [0, 0], sizes = [32, 8], strides = [1, 1]} : vector<32x16xf32> to vector<32x8xf32>
    %24 = arith.truncf %23 : vector<32x8xf32> to vector<32x8xbf16>
    %c0_18 = arith.constant 0 : index
    %c0_19 = arith.constant 0 : index
    %c0_20 = arith.constant 0 : index
    %c0_21 = arith.constant 0 : index
    %25 = vector.load %arg8[%c0_18, %c0_19, %c0_20, %c0_21] : memref<1x2x32x8xbf16, #tpu.memory_space<vmem>>, vector<1x1x32x8xbf16>
    %26 = vector.shape_cast %25 : vector<1x1x32x8xbf16> to vector<32x8xbf16>
    %27 = vector.shape_cast %24 : vector<32x8xbf16> to vector<1x1x32x8xbf16>
    tpu.vector_store %arg8[%c0_18, %c0_19, %c0_20, %c0_21], %27 {strides = array<i32>} : memref<1x2x32x8xbf16, #tpu.memory_space<vmem>>, vector<1x1x32x8xbf16>,
    %28 = vector.extract_strided_slice %17 {offsets = [0, 0], sizes = [32, 8], strides = [1, 1]} : vector<32x16xf32> to vector<32x8xf32>
    %29 = arith.truncf %28 : vector<32x8xf32> to vector<32x8xbf16>
    %c0_22 = arith.constant 0 : index
    %c0_23 = arith.constant 0 : index
    %c0_24 = arith.constant 0 : index
    %c0_25 = arith.constant 0 : index
    %30 = vector.load %arg9[%c0_22, %c0_23, %c0_24, %c0_25] : memref<1x2x32x8xbf16, #tpu.memory_space<vmem>>, vector<1x1x32x8xbf16>
    %31 = vector.shape_cast %30 : vector<1x1x32x8xbf16> to vector<32x8xbf16>
    %32 = vector.shape_cast %29 : vector<32x8xbf16> to vector<1x1x32x8xbf16>
    tpu.vector_store %arg9[%c0_22, %c0_23, %c0_24, %c0_25], %32 {strides = array<i32>} : memref<1x2x32x8xbf16, #tpu.memory_space<vmem>>, vector<1x1x32x8xbf16>,
    %33 = vector.extract_strided_slice %22 {offsets = [0, 0], sizes = [32, 8], strides = [1, 1]} : vector<32x16xf32> to vector<32x8xf32>
    %34 = arith.truncf %33 : vector<32x8xf32> to vector<32x8xbf16>
    %c0_26 = arith.constant 0 : index
    %c0_27 = arith.constant 0 : index
    %c0_28 = arith.constant 0 : index
    %c0_29 = arith.constant 0 : index
    %35 = vector.load %arg10[%c0_26, %c0_27, %c0_28, %c0_29] : memref<1x2x32x8xbf16, #tpu.memory_space<vmem>>, vector<1x1x32x8xbf16>
    %36 = vector.shape_cast %35 : vector<1x1x32x8xbf16> to vector<32x8xbf16>
    %37 = vector.shape_cast %34 : vector<32x8xbf16> to vector<1x1x32x8xbf16>
    tpu.vector_store %arg10[%c0_26, %c0_27, %c0_28, %c0_29], %37 {strides = array<i32>} : memref<1x2x32x8xbf16, #tpu.memory_space<vmem>>, vector<1x1x32x8xbf16>,
    %38 = vector.extract_strided_slice %12 {offsets = [0, 8], sizes = [32, 8], strides = [1, 1]} : vector<32x16xf32> to vector<32x8xf32>
    %39 = arith.truncf %38 : vector<32x8xf32> to vector<32x8xbf16>
    %c0_30 = arith.constant 0 : index
    %c1_31 = arith.constant 1 : index
    %c0_32 = arith.constant 0 : index
    %c0_33 = arith.constant 0 : index
    %40 = vector.load %arg8[%c0_30, %c1_31, %c0_32, %c0_33] : memref<1x2x32x8xbf16, #tpu.memory_space<vmem>>, vector<1x1x32x8xbf16>
    %41 = vector.shape_cast %40 : vector<1x1x32x8xbf16> to vector<32x8xbf16>
    %42 = vector.shape_cast %39 : vector<32x8xbf16> to vector<1x1x32x8xbf16>
    tpu.vector_store %arg8[%c0_30, %c1_31, %c0_32, %c0_33], %42 {strides = array<i32>} : memref<1x2x32x8xbf16, #tpu.memory_space<vmem>>, vector<1x1x32x8xbf16>,
    %43 = vector.extract_strided_slice %17 {offsets = [0, 8], sizes = [32, 8], strides = [1, 1]} : vector<32x16xf32> to vector<32x8xf32>
    %44 = arith.truncf %43 : vector<32x8xf32> to vector<32x8xbf16>
    %c0_34 = arith.constant 0 : index
    %c1_35 = arith.constant 1 : index
    %c0_36 = arith.constant 0 : index
    %c0_37 = arith.constant 0 : index
    %45 = vector.load %arg9[%c0_34, %c1_35, %c0_36, %c0_37] : memref<1x2x32x8xbf16, #tpu.memory_space<vmem>>, vector<1x1x32x8xbf16>
    %46 = vector.shape_cast %45 : vector<1x1x32x8xbf16> to vector<32x8xbf16>
    %47 = vector.shape_cast %44 : vector<32x8xbf16> to vector<1x1x32x8xbf16>
    tpu.vector_store %arg9[%c0_34, %c1_35, %c0_36, %c0_37], %47 {strides = array<i32>} : memref<1x2x32x8xbf16, #tpu.memory_space<vmem>>, vector<1x1x32x8xbf16>,
    %48 = vector.extract_strided_slice %22 {offsets = [0, 8], sizes = [32, 8], strides = [1, 1]} : vector<32x16xf32> to vector<32x8xf32>
    %49 = arith.truncf %48 : vector<32x8xf32> to vector<32x8xbf16>
    %c0_38 = arith.constant 0 : index
    %c1_39 = arith.constant 1 : index
    %c0_40 = arith.constant 0 : index
    %c0_41 = arith.constant 0 : index
    %50 = vector.load %arg10[%c0_38, %c1_39, %c0_40, %c0_41] : memref<1x2x32x8xbf16, #tpu.memory_space<vmem>>, vector<1x1x32x8xbf16>
    %51 = vector.shape_cast %50 : vector<1x1x32x8xbf16> to vector<32x8xbf16>
    %52 = vector.shape_cast %49 : vector<32x8xbf16> to vector<1x1x32x8xbf16>
    tpu.vector_store %arg10[%c0_38, %c1_39, %c0_40, %c0_41], %52 {strides = array<i32>} : memref<1x2x32x8xbf16, #tpu.memory_space<vmem>>, vector<1x1x32x8xbf16>,
    return
  }
  func.func @transform_0(%arg0: i32, %arg1: i32) -> (i32, i32, i32) {
    %c0_i32 = arith.constant 0 : i32
    %c0_i32_0 = arith.constant 0 : i32
    return %arg0, %arg1, %c0_i32 : i32, i32, i32
  }
  func.func @transform_1(%arg0: i32, %arg1: i32) -> (i32, i32, i32) {
    %c0_i32 = arith.constant 0 : i32
    %c0_i32_0 = arith.constant 0 : i32
    return %arg0, %arg1, %c0_i32 : i32, i32, i32
  }
  func.func @transform_2(%arg0: i32, %arg1: i32) -> (i32, i32) {
    %c0_i32 = arith.constant 0 : i32
    %c0_i32_0 = arith.constant 0 : i32
    %c0_i32_1 = arith.constant 0 : i32
    return %c0_i32, %c0_i32_0 : i32, i32
  }
  func.func @transform_3(%arg0: i32, %arg1: i32) -> (i32, i32) {
    %c0_i32 = arith.constant 0 : i32
    %c0_i32_0 = arith.constant 0 : i32
    %c0_i32_1 = arith.constant 0 : i32
    return %c0_i32, %c0_i32_0 : i32, i32
  }
  func.func @transform_4(%arg0: i32, %arg1: i32) -> (i32, i32) {
    %c0_i32 = arith.constant 0 : i32
    %c0_i32_0 = arith.constant 0 : i32
    %c0_i32_1 = arith.constant 0 : i32
    return %c0_i32, %c0_i32_0 : i32, i32
  }
  func.func @transform_5(%arg0: i32, %arg1: i32) -> (i32, i32) {
    %c0_i32 = arith.constant 0 : i32
    %c0_i32_0 = arith.constant 0 : i32
    %c0_i32_1 = arith.constant 0 : i32
    return %c0_i32, %c0_i32_0 : i32, i32
  }
  func.func @transform_6(%arg0: i32, %arg1: i32) -> (i32, i32, i32, i32) {
    %c0_i32 = arith.constant 0 : i32
    %c0_i32_0 = arith.constant 0 : i32
    %c0_i32_1 = arith.constant 0 : i32
    return %arg0, %c0_i32, %arg1, %c0_i32_0 : i32, i32, i32, i32
  }
  func.func @transform_7(%arg0: i32, %arg1: i32) -> (i32, i32, i32, i32) {
    %c0_i32 = arith.constant 0 : i32
    %c0_i32_0 = arith.constant 0 : i32
    %c0_i32_1 = arith.constant 0 : i32
    return %arg0, %c0_i32, %arg1, %c0_i32_0 : i32, i32, i32, i32
  }
  func.func @transform_8(%arg0: i32, %arg1: i32) -> (i32, i32, i32, i32) {
    %c0_i32 = arith.constant 0 : i32
    %c0_i32_0 = arith.constant 0 : i32
    %c0_i32_1 = arith.constant 0 : i32
    return %arg0, %c0_i32, %arg1, %c0_i32_0 : i32, i32, i32, i32
  }
}

module attributes {stable_mosaic.version = 11 : i64} {
  func.func @_qkv_proj_kernel(%arg0: i32, %arg1: i32, %arg2: memref<1x32x32xf32, #tpu.memory_space<vmem>>, %arg3: memref<1x32x32xf32, #tpu.memory_space<vmem>>, %arg4: memref<32x16xbf16, #tpu.memory_space<vmem>>, %arg5: memref<32x16xbf16, #tpu.memory_space<vmem>>, %arg6: memref<32x16xbf16, #tpu.memory_space<vmem>>, %arg7: memref<3x16xf32, #tpu.memory_space<vmem>>, %arg8: memref<1x2x32x8xbf16, #tpu.memory_space<vmem>>, %arg9: memref<1x2x32x8xbf16, #tpu.memory_space<vmem>>, %arg10: memref<1x2x32x8xbf16, #tpu.memory_space<vmem>>) attributes {dimension_semantics = [#tpu.dimension_semantics<parallel>, #tpu.dimension_semantics<parallel>], iteration_bounds = array<i64: 2, 1>, scalar_prefetch = 0 : i64, scratch_operands = 0 : i64, tpu.core_type = #tpu.core_type<tc>, window_params = [{transform_indices = @transform_0, window_bounds = array<i64: 1, 32, 32>}, {transform_indices = @transform_1, window_bounds = array<i64: 1, 32, 32>}, {pipeline_mode = #tpu.pipeline_mode<synchronous>, transform_indices = @transform_2, window_bounds = array<i64: 32, 16>}, {pipeline_mode = #tpu.pipeline_mode<synchronous>, transform_indices = @transform_3, window_bounds = array<i64: 32, 16>}, {pipeline_mode = #tpu.pipeline_mode<synchronous>, transform_indices = @transform_4, window_bounds = array<i64: 32, 16>}, {pipeline_mode = #tpu.pipeline_mode<synchronous>, transform_indices = @transform_5, window_bounds = array<i64: 3, 16>}, {transform_indices = @transform_6, window_bounds = array<i64: 1, 2, 32, 8>}, {transform_indices = @transform_7, window_bounds = array<i64: 1, 2, 32, 8>}, {transform_indices = @transform_8, window_bounds = array<i64: 1, 2, 32, 8>}]} {
    %c0 = arith.constant 0 : index
    %c0_0 = arith.constant 0 : index
    %c0_1 = arith.constant 0 : index
    %0 = vector.load %arg2[%c0, %c0_0, %c0_1] : memref<1x32x32xf32, #tpu.memory_space<vmem>>, vector<1x32x32xf32>
    %1 = vector.shape_cast %0 : vector<1x32x32xf32> to vector<32x32xf32>
    %2 = arith.truncf %1 : vector<32x32xf32> to vector<32x32xbf16>
    %c0_2 = arith.constant 0 : index
    %c0_3 = arith.constant 0 : index
    %c0_4 = arith.constant 0 : index
    %3 = vector.load %arg3[%c0_2, %c0_3, %c0_4] : memref<1x32x32xf32, #tpu.memory_space<vmem>>, vector<1x32x32xf32>
    %4 = vector.shape_cast %3 : vector<1x32x32xf32> to vector<32x32xf32>
    %5 = arith.truncf %4 : vector<32x32xf32> to vector<32x32xbf16>
    %c0_5 = arith.constant 0 : index
    %c0_6 = arith.constant 0 : index
    %6 = vector.load %arg4[%c0_5, %c0_6] : memref<32x16xbf16, #tpu.memory_space<vmem>>, vector<32x16xbf16>
    %cst = arith.constant dense<0.000000e+00> : vector<32x16xf32>
    %7 = tpu.matmul %2, %6, %cst {dimension_numbers = #tpu.dot_dimension_numbers<[1], [0], [0], [1], [0, 0, 1, 1], [], []>} : vector<32x32xbf16>, vector<32x16xbf16>, vector<32x16xf32> -> vector<32x16xf32>
    %c0_7 = arith.constant 0 : index
    %c0_8 = arith.constant 0 : index
    %8 = vector.load %arg7[%c0_7, %c0_8] : memref<3x16xf32, #tpu.memory_space<vmem>>, vector<1x16xf32>
    %9 = vector.broadcast %8 : vector<1x16xf32> to vector<32x16xf32>
    %10 = arith.addf %7, %9 : vector<32x16xf32>
    %cst_9 = arith.constant 0.353553385 : f32
    %11 = vector.broadcast %cst_9 : f32 to vector<32x16xf32>
    %12 = arith.mulf %10, %11 : vector<32x16xf32>
    %c0_10 = arith.constant 0 : index
    %c0_11 = arith.constant 0 : index
    %13 = vector.load %arg5[%c0_10, %c0_11] : memref<32x16xbf16, #tpu.memory_space<vmem>>, vector<32x16xbf16>
    %cst_12 = arith.constant dense<0.000000e+00> : vector<32x16xf32>
    %14 = tpu.matmul %2, %13, %cst_12 {dimension_numbers = #tpu.dot_dimension_numbers<[1], [0], [0], [1], [0, 0, 1, 1], [], []>} : vector<32x32xbf16>, vector<32x16xbf16>, vector<32x16xf32> -> vector<32x16xf32>
    %c1 = arith.constant 1 : index
    %c0_13 = arith.constant 0 : index
    %15 = vector.load %arg7[%c1, %c0_13] : memref<3x16xf32, #tpu.memory_space<vmem>>, vector<1x16xf32>
    %16 = vector.broadcast %15 : vector<1x16xf32> to vector<32x16xf32>
    %17 = arith.addf %14, %16 : vector<32x16xf32>
    %c0_14 = arith.constant 0 : index
    %c0_15 = arith.constant 0 : index
    %18 = vector.load %arg6[%c0_14, %c0_15] : memref<32x16xbf16, #tpu.memory_space<vmem>>, vector<32x16xbf16>
    %cst_16 = arith.constant dense<0.000000e+00> : vector<32x16xf32>
    %19 = tpu.matmul %5, %18, %cst_16 {dimension_numbers = #tpu.dot_dimension_numbers<[1], [0], [0], [1], [0, 0, 1, 1], [], []>} : vector<32x32xbf16>, vector<32x16xbf16>, vector<32x16xf32> -> vector<32x16xf32>
    %c2 = arith.constant 2 : index
    %c0_17 = arith.constant 0 : index
    %20 = vector.load %arg7[%c2, %c0_17] : memref<3x16xf32, #tpu.memory_space<vmem>>, vector<1x16xf32>
    %21 = vector.broadcast %20 : vector<1x16xf32> to vector<32x16xf32>
    %22 = arith.addf %19, %21 : vector<32x16xf32>
    %23 = vector.extract_strided_slice %12 {offsets = [0, 0], sizes = [32, 8], strides = [1, 1]} : vector<32x16xf32> to vector<32x8xf32>
    %24 = arith.truncf %23 : vector<32x8xf32> to vector<32x8xbf16>
    %c0_18 = arith.constant 0 : index
    %c0_19 = arith.constant 0 : index
    %c0_20 = arith.constant 0 : index
    %c0_21 = arith.constant 0 : index
    %25 = vector.load %arg8[%c0_18, %c0_19, %c0_20, %c0_21] : memref<1x2x32x8xbf16, #tpu.memory_space<vmem>>, vector<1x1x32x8xbf16>
    %26 = vector.shape_cast %25 : vector<1x1x32x8xbf16> to vector<32x8xbf16>
    %27 = vector.shape_cast %24 : vector<32x8xbf16> to vector<1x1x32x8xbf16>
    tpu.vector_store %arg8[%c0_18, %c0_19, %c0_20, %c0_21], %27 {strides = array<i32>} : memref<1x2x32x8xbf16, #tpu.memory_space<vmem>>, vector<1x1x32x8xbf16>,
    %28 = vector.extract_strided_slice %17 {offsets = [0, 0], sizes = [32, 8], strides = [1, 1]} : vector<32x16xf32> to vector<32x8xf32>
    %29 = arith.truncf %28 : vector<32x8xf32> to vector<32x8xbf16>
    %c0_22 = arith.constant 0 : index
    %c0_23 = arith.constant 0 : index
    %c0_24 = arith.constant 0 : index
    %c0_25 = arith.constant 0 : index
    %30 = vector.load %arg9[%c0_22, %c0_23, %c0_24, %c0_25] : memref<1x2x32x8xbf16, #tpu.memory_space<vmem>>, vector<1x1x32x8xbf16>
    %31 = vector.shape_cast %30 : vector<1x1x32x8xbf16> to vector<32x8xbf16>
    %32 = vector.shape_cast %29 : vector<32x8xbf16> to vector<1x1x32x8xbf16>
    tpu.vector_store %arg9[%c0_22, %c0_23, %c0_24, %c0_25], %32 {strides = array<i32>} : memref<1x2x32x8xbf16, #tpu.memory_space<vmem>>, vector<1x1x32x8xbf16>,
    %33 = vector.extract_strided_slice %22 {offsets = [0, 0], sizes = [32, 8], strides = [1, 1]} : vector<32x16xf32> to vector<32x8xf32>
    %34 = arith.truncf %33 : vector<32x8xf32> to vector<32x8xbf16>
    %c0_26 = arith.constant 0 : index
    %c0_27 = arith.constant 0 : index
    %c0_28 = arith.constant 0 : index
    %c0_29 = arith.constant 0 : index
    %35 = vector.load %arg10[%c0_26, %c0_27, %c0_28, %c0_29] : memref<1x2x32x8xbf16, #tpu.memory_space<vmem>>, vector<1x1x32x8xbf16>
    %36 = vector.shape_cast %35 : vector<1x1x32x8xbf16> to vector<32x8xbf16>
    %37 = vector.shape_cast %34 : vector<32x8xbf16> to vector<1x1x32x8xbf16>
    tpu.vector_store %arg10[%c0_26, %c0_27, %c0_28, %c0_29], %37 {strides = array<i32>} : memref<1x2x32x8xbf16, #tpu.memory_space<vmem>>, vector<1x1x32x8xbf16>,
    %38 = vector.extract_strided_slice %12 {offsets = [0, 8], sizes = [32, 8], strides = [1, 1]} : vector<32x16xf32> to vector<32x8xf32>
    %39 = arith.truncf %38 : vector<32x8xf32> to vector<32x8xbf16>
    %c0_30 = arith.constant 0 : index
    %c1_31 = arith.constant 1 : index
    %c0_32 = arith.constant 0 : index
    %c0_33 = arith.constant 0 : index
    %40 = vector.load %arg8[%c0_30, %c1_31, %c0_32, %c0_33] : memref<1x2x32x8xbf16, #tpu.memory_space<vmem>>, vector<1x1x32x8xbf16>
    %41 = vector.shape_cast %40 : vector<1x1x32x8xbf16> to vector<32x8xbf16>
    %42 = vector.shape_cast %39 : vector<32x8xbf16> to vector<1x1x32x8xbf16>
    tpu.vector_store %arg8[%c0_30, %c1_31, %c0_32, %c0_33], %42 {strides = array<i32>} : memref<1x2x32x8xbf16, #tpu.memory_space<vmem>>, vector<1x1x32x8xbf16>,
    %43 = vector.extract_strided_slice %17 {offsets = [0, 8], sizes = [32, 8], strides = [1, 1]} : vector<32x16xf32> to vector<32x8xf32>
    %44 = arith.truncf %43 : vector<32x8xf32> to vector<32x8xbf16>
    %c0_34 = arith.constant 0 : index
    %c1_35 = arith.constant 1 : index
    %c0_36 = arith.constant 0 : index
    %c0_37 = arith.constant 0 : index
    %45 = vector.load %arg9[%c0_34, %c1_35, %c0_36, %c0_37] : memref<1x2x32x8xbf16, #tpu.memory_space<vmem>>, vector<1x1x32x8xbf16>
    %46 = vector.shape_cast %45 : vector<1x1x32x8xbf16> to vector<32x8xbf16>
    %47 = vector.shape_cast %44 : vector<32x8xbf16> to vector<1x1x32x8xbf16>
    tpu.vector_store %arg9[%c0_34, %c1_35, %c0_36, %c0_37], %47 {strides = array<i32>} : memref<1x2x32x8xbf16, #tpu.memory_space<vmem>>, vector<1x1x32x8xbf16>,
    %48 = vector.extract_strided_slice %22 {offsets = [0, 8], sizes = [32, 8], strides = [1, 1]} : vector<32x16xf32> to vector<32x8xf32>
    %49 = arith.truncf %48 : vector<32x8xf32> to vector<32x8xbf16>
    %c0_38 = arith.constant 0 : index
    %c1_39 = arith.constant 1 : index
    %c0_40 = arith.constant 0 : index
    %c0_41 = arith.constant 0 : index
    %50 = vector.load %arg10[%c0_38, %c1_39, %c0_40, %c0_41] : memref<1x2x32x8xbf16, #tpu.memory_space<vmem>>, vector<1x1x32x8xbf16>
    %51 = vector.shape_cast %50 : vector<1x1x32x8xbf16> to vector<32x8xbf16>
    %52 = vector.shape_cast %49 : vector<32x8xbf16> to vector<1x1x32x8xbf16>
    tpu.vector_store %arg10[%c0_38, %c1_39, %c0_40, %c0_41], %52 {strides = array<i32>} : memref<1x2x32x8xbf16, #tpu.memory_space<vmem>>, vector<1x1x32x8xbf16>,
    return
  }
  func.func @transform_0(%arg0: i32, %arg1: i32) -> (i32, i32, i32) {
    %c0_i32 = arith.constant 0 : i32
    %c0_i32_0 = arith.constant 0 : i32
    return %arg0, %arg1, %c0_i32 : i32, i32, i32
  }
  func.func @transform_1(%arg0: i32, %arg1: i32) -> (i32, i32, i32) {
    %c0_i32 = arith.constant 0 : i32
    %c0_i32_0 = arith.constant 0 : i32
    return %arg0, %arg1, %c0_i32 : i32, i32, i32
  }
  func.func @transform_2(%arg0: i32, %arg1: i32) -> (i32, i32) {
    %c0_i32 = arith.constant 0 : i32
    %c0_i32_0 = arith.constant 0 : i32
    %c0_i32_1 = arith.constant 0 : i32
    return %c0_i32, %c0_i32_0 : i32, i32
  }
  func.func @transform_3(%arg0: i32, %arg1: i32) -> (i32, i32) {
    %c0_i32 = arith.constant 0 : i32
    %c0_i32_0 = arith.constant 0 : i32
    %c0_i32_1 = arith.constant 0 : i32
    return %c0_i32, %c0_i32_0 : i32, i32
  }
  func.func @transform_4(%arg0: i32, %arg1: i32) -> (i32, i32) {
    %c0_i32 = arith.constant 0 : i32
    %c0_i32_0 = arith.constant 0 : i32
    %c0_i32_1 = arith.constant 0 : i32
    return %c0_i32, %c0_i32_0 : i32, i32
  }
  func.func @transform_5(%arg0: i32, %arg1: i32) -> (i32, i32) {
    %c0_i32 = arith.constant 0 : i32
    %c0_i32_0 = arith.constant 0 : i32
    %c0_i32_1 = arith.constant 0 : i32
    return %c0_i32, %c0_i32_0 : i32, i32
  }
  func.func @transform_6(%arg0: i32, %arg1: i32) -> (i32, i32, i32, i32) {
    %c0_i32 = arith.constant 0 : i32
    %c0_i32_0 = arith.constant 0 : i32
    %c0_i32_1 = arith.constant 0 : i32
    return %arg0, %c0_i32, %arg1, %c0_i32_0 : i32, i32, i32, i32
  }
  func.func @transform_7(%arg0: i32, %arg1: i32) -> (i32, i32, i32, i32) {
    %c0_i32 = arith.constant 0 : i32
    %c0_i32_0 = arith.constant 0 : i32
    %c0_i32_1 = arith.constant 0 : i32
    return %arg0, %c0_i32, %arg1, %c0_i32_0 : i32, i32, i32, i32
  }
  func.func @transform_8(%arg0: i32, %arg1: i32) -> (i32, i32, i32, i32) {
    %c0_i32 = arith.constant 0 : i32
    %c0_i32_0 = arith.constant 0 : i32
    %c0_i32_1 = arith.constant 0 : i32
    return %arg0, %c0_i32, %arg1, %c0_i32_0 : i32, i32, i32, i32
  }
}

</mosaic_0001>

<llo_original>
// kernel: tpu_custom_call.1
$region0: #{tpu_custom_call.1}
  #allocation0 [shape = 'u32[]', space=smem, size = 0x4, offset = 0x4, fixed_abs, tag = 'smem constant byte address 0x4 - core index']
  #allocation1 [shape = 'u32[72,128]{1,0:T(1,128)}', space=vmem, size = 0x9000, scoped, tag = 'internal scratch']
  %s0 = inlined_call_operand.hbm [shape: f32[2,32,32], index: 0, kind: input, shape index: {}]
  %s1 = inlined_call_operand.hbm [shape: f32[2,32,32], index: 1, kind: input, shape index: {}]
  %s2 = inlined_call_operand.vmem [shape: bf16[32,16], index: 2, kind: input, shape index: {}]
  %s3 = inlined_call_operand.vmem [shape: bf16[32,16], index: 3, kind: input, shape index: {}]
  %s4 = inlined_call_operand.vmem [shape: bf16[32,16], index: 4, kind: input, shape index: {}]
  %s5 = inlined_call_operand.vmem [shape: f32[3,16], index: 5, kind: input, shape index: {}]
  %s6 = inlined_call_operand.vmem [shape: bf16[2,2,32,8], index: 6, kind: output, shape index: {0}]
  %s7 = inlined_call_operand.vmem [shape: bf16[2,2,32,8], index: 7, kind: output, shape index: {1}]
  %s8 = inlined_call_operand.vmem [shape: bf16[2,2,32,8], index: 8, kind: output, shape index: {2}]
  %9 = xla_tuple %s6, %s7, %s8
  %s10 = sld [smem:[#allocation0]]
  $region81: #{tpu_custom_call.1} parent=0
    _
  %s12 = ssub.s32 1, %s10
  %s13 = scalar_select 0, %s12, %s10
  $region1: #{tpu_custom_call.1} parent=0
    #allocation2 [shape = 'u8[32768]{0}', space=vmem, size = 0x8000, scoped, tag = 'input window, operand 0']
    #allocation3 [shape = 's32[2]{0}', space=sflag, size = 0x8, scoped, tag = 'scoped memory for tpu_custom_call.1']
    #allocation4 [shape = 'u8[32768]{0}', space=vmem, size = 0x8000, scoped, tag = 'input window, operand 1']
    #allocation5 [shape = 's32[2]{0}', space=sflag, size = 0x8, scoped, tag = 'scoped memory for tpu_custom_call.1']
    %14 = vsyncpa [#allocation3], 0
    %s15 = scalar_lea.sflag [#allocation3], 1
    %16 = vsyncpa %s15, 0
    %17 = vsyncpa [#allocation5], 0
    %s18 = scalar_lea.sflag [#allocation5], 1
    %19 = vsyncpa %s18, 0
    loop: start=0, step=1, limit=4
    $region2: #{tpu_custom_call.1} parent=1 // loop_pre_header
      _
    $region3: #{tpu_custom_call.1} parent=1 // loop_header
      %s21 = sphi 0, %s25
      %p22 = scmp.ge.s32.totalorder %s21, 4
      %s28 = sphi 0, %s40
      %s29 = sphi 0, %s36
      %s30 = sphi 0, %s28
      %s31 = sphi 0, %s29
      %s32 = sphi 0, %s30
      %s33 = sphi 0, %s31
      %s45 = sphi 0, %s47
      %s48 = sphi 0, %s45
      %s49 = sphi 0, %s48
      %s65 = sphi 0, %s49
      %s73 = sphi 0, %s75
      %s76 = sphi 0, %s73
      %s77 = sphi 0, %s76
      %s93 = sphi 0, %s77
      %s97 = sphi 0, %s97
      %s99 = sphi 0, %s97
      %s100 = sphi 0, %s99
      %s114 = sphi 0, %s100
      %s118 = sphi 0, %s118
      %s120 = sphi 0, %s118
      %s121 = sphi 0, %s120
      %s135 = sphi 0, %s121
      %s139 = sphi 0, %s139
      %s141 = sphi 0, %s139
      %s142 = sphi 0, %s141
      %s156 = sphi 0, %s142
      %s160 = sphi 0, %s160
      %s162 = sphi 0, %s160
      %s163 = sphi 0, %s162
      %s177 = sphi 0, %s163
      %s185 = sphi 0, %s187
      %s188 = sphi 0, %s185
      %s189 = sphi 0, %s188
      %s205 = sphi 0, %s189
      %s213 = sphi 0, %s215
      %s216 = sphi 0, %s213
      %s217 = sphi 0, %s216
      %s233 = sphi 0, %s217
      %s241 = sphi 0, %s243
      %s244 = sphi 0, %s241
      %s245 = sphi 0, %s244
      %s261 = sphi 0, %s245
    $region4: #{tpu_custom_call.1} parent=1 // loop_header_branch
      %24 = sbr.rel (%p22) target = $region8
    $region5: #{tpu_custom_call.1} parent=1 // loop_body
      %s26 = ssub.s32 %s21, 1
      %s27 = ssub.s32 %s21, 2
      %s34 = sadd.s32 1, %s29
      %p35 = scmp.ge.s32.totalorder %s34, 1
      %s36 = scalar_select %p35, 0, %s34
      %s37 = sadd.s32 1, %s28
      %s38 = scalar_select %p35, %s37, %s28
      %p39 = scmp.ge.s32.totalorder %s38, 2
      %s40 = scalar_select %p39, 0, %s38
      %s41 = ssub.s32 %s28, %s40
      %s42 = ssub.s32 %s29, %s36
      %s43 = sor.u32 %s41, %s42
      %p44 = scmp.eq.s32.totalorder %s43, 0
      %s46 = sadd.s32 %s45, 1
      %s47 = scalar_select %p44, %s45, %s46
      %p50 = pneg %p44
      %p51 = scmp.eq.s32.totalorder %s21, 1
      %p52 = por %p50, %p51
      %p53 = scmp.ne.s32.totalorder %s45, %s48
      %p54 = scmp.eq.s32.totalorder %s21, 0
      %p55 = por %p53, %p54
      %p56 = scmp.ne.s32.totalorder %s45, %s48
      %p57 = scmp.eq.s32.totalorder %s26, 1
      %p58 = por %p56, %p57
      %p59 = scmp.ne.s32.totalorder %s48, %s49
      %p60 = scmp.eq.s32.totalorder %s26, 0
      %p61 = por %p59, %p60
      %p62 = scmp.ne.s32.totalorder %s48, %s49
      %p63 = scmp.eq.s32.totalorder %s27, 1
      %p64 = por %p62, %p63
      %p66 = scmp.ne.s32.totalorder %s49, %s65
      %p67 = scmp.eq.s32.totalorder %s27, 0
      %p68 = por %p66, %p67
      %s69 = ssub.s32 %s28, %s40
      %s70 = ssub.s32 %s29, %s36
      %s71 = sor.u32 %s69, %s70
      %p72 = scmp.eq.s32.totalorder %s71, 0
      %s74 = sadd.s32 %s73, 1
      %s75 = scalar_select %p72, %s73, %s74
      %p78 = pneg %p72
      %p79 = scmp.eq.s32.totalorder %s21, 1
      %p80 = por %p78, %p79
      %p81 = scmp.ne.s32.totalorder %s73, %s76
      %p82 = scmp.eq.s32.totalorder %s21, 0
      %p83 = por %p81, %p82
      %p84 = scmp.ne.s32.totalorder %s73, %s76
      %p85 = scmp.eq.s32.totalorder %s26, 1
      %p86 = por %p84, %p85
      %p87 = scmp.ne.s32.totalorder %s76, %s77
      %p88 = scmp.eq.s32.totalorder %s26, 0
      %p89 = por %p87, %p88
      %p90 = scmp.ne.s32.totalorder %s76, %s77
      %p91 = scmp.eq.s32.totalorder %s27, 1
      %p92 = por %p90, %p91
      %p94 = scmp.ne.s32.totalorder %s77, %s93
      %p95 = scmp.eq.s32.totalorder %s27, 0
      %p96 = por %p94, %p95
      %s98 = sadd.s32 %s97, 1
      %p101 = scmp.eq.s32.totalorder %s21, 1
      %p102 = scmp.ne.s32.totalorder %s97, %s99
      %p103 = scmp.eq.s32.totalorder %s21, 0
      %p104 = por %p102, %p103
      %p105 = scmp.ne.s32.totalorder %s97, %s99
      %p106 = scmp.eq.s32.totalorder %s26, 1
      %p107 = por %p105, %p106
      %p108 = scmp.ne.s32.totalorder %s99, %s100
      %p109 = scmp.eq.s32.totalorder %s26, 0
      %p110 = por %p108, %p109
      %p111 = scmp.ne.s32.totalorder %s99, %s100
      %p112 = scmp.eq.s32.totalorder %s27, 1
      %p113 = por %p111, %p112
      %p115 = scmp.ne.s32.totalorder %s100, %s114
      %p116 = scmp.eq.s32.totalorder %s27, 0
      %p117 = por %p115, %p116
      %s119 = sadd.s32 %s118, 1
      %p122 = scmp.eq.s32.totalorder %s21, 1
      %p123 = scmp.ne.s32.totalorder %s118, %s120
      %p124 = scmp.eq.s32.totalorder %s21, 0
      %p125 = por %p123, %p124
      %p126 = scmp.ne.s32.totalorder %s118, %s120
      %p127 = scmp.eq.s32.totalorder %s26, 1
      %p128 = por %p126, %p127
      %p129 = scmp.ne.s32.totalorder %s120, %s121
      %p130 = scmp.eq.s32.totalorder %s26, 0
      %p131 = por %p129, %p130
      %p132 = scmp.ne.s32.totalorder %s120, %s121
      %p133 = scmp.eq.s32.totalorder %s27, 1
      %p134 = por %p132, %p133
      %p136 = scmp.ne.s32.totalorder %s121, %s135
      %p137 = scmp.eq.s32.totalorder %s27, 0
      %p138 = por %p136, %p137
      %s140 = sadd.s32 %s139, 1
      %p143 = scmp.eq.s32.totalorder %s21, 1
      %p144 = scmp.ne.s32.totalorder %s139, %s141
      %p145 = scmp.eq.s32.totalorder %s21, 0
      %p146 = por %p144, %p145
      %p147 = scmp.ne.s32.totalorder %s139, %s141
      %p148 = scmp.eq.s32.totalorder %s26, 1
      %p149 = por %p147, %p148
      %p150 = scmp.ne.s32.totalorder %s141, %s142
      %p151 = scmp.eq.s32.totalorder %s26, 0
      %p152 = por %p150, %p151
      %p153 = scmp.ne.s32.totalorder %s141, %s142
      %p154 = scmp.eq.s32.totalorder %s27, 1
      %p155 = por %p153, %p154
      %p157 = scmp.ne.s32.totalorder %s142, %s156
      %p158 = scmp.eq.s32.totalorder %s27, 0
      %p159 = por %p157, %p158
      %s161 = sadd.s32 %s160, 1
      %p164 = scmp.eq.s32.totalorder %s21, 1
      %p165 = scmp.ne.s32.totalorder %s160, %s162
      %p166 = scmp.eq.s32.totalorder %s21, 0
      %p167 = por %p165, %p166
      %p168 = scmp.ne.s32.totalorder %s160, %s162
      %p169 = scmp.eq.s32.totalorder %s26, 1
      %p170 = por %p168, %p169
      %p171 = scmp.ne.s32.totalorder %s162, %s163
      %p172 = scmp.eq.s32.totalorder %s26, 0
      %p173 = por %p171, %p172
      %p174 = scmp.ne.s32.totalorder %s162, %s163
      %p175 = scmp.eq.s32.totalorder %s27, 1
      %p176 = por %p174, %p175
      %p178 = scmp.ne.s32.totalorder %s163, %s177
      %p179 = scmp.eq.s32.totalorder %s27, 0
      %p180 = por %p178, %p179
      %s181 = ssub.s32 %s28, %s40
      %s182 = ssub.s32 %s29, %s36
      %s183 = sor.u32 %s181, %s182
      %p184 = scmp.eq.s32.totalorder %s183, 0
      %s186 = sadd.s32 %s185, 1
      %s187 = scalar_select %p184, %s185, %s186
      %p190 = pneg %p184
      %p191 = scmp.eq.s32.totalorder %s21, 1
      %p192 = por %p190, %p191
      %p193 = scmp.ne.s32.totalorder %s185, %s188
      %p194 = scmp.eq.s32.totalorder %s21, 0
      %p195 = por %p193, %p194
      %p196 = scmp.ne.s32.totalorder %s185, %s188
      %p197 = scmp.eq.s32.totalorder %s26, 1
      %p198 = por %p196, %p197
      %p199 = scmp.ne.s32.totalorder %s188, %s189
      %p200 = scmp.eq.s32.totalorder %s26, 0
      %p201 = por %p199, %p200
      %p202 = scmp.ne.s32.totalorder %s188, %s189
      %p203 = scmp.eq.s32.totalorder %s27, 1
      %p204 = por %p202, %p203
      %p206 = scmp.ne.s32.totalorder %s189, %s205
      %p207 = scmp.eq.s32.totalorder %s27, 0
      %p208 = por %p206, %p207
      %s209 = ssub.s32 %s28, %s40
      %s210 = ssub.s32 %s29, %s36
      %s211 = sor.u32 %s209, %s210
      %p212 = scmp.eq.s32.totalorder %s211, 0
      %s214 = sadd.s32 %s213, 1
      %s215 = scalar_select %p212, %s213, %s214
      %p218 = pneg %p212
      %p219 = scmp.eq.s32.totalorder %s21, 1
      %p220 = por %p218, %p219
      %p221 = scmp.ne.s32.totalorder %s213, %s216
      %p222 = scmp.eq.s32.totalorder %s21, 0
      %p223 = por %p221, %p222
      %p224 = scmp.ne.s32.totalorder %s213, %s216
      %p225 = scmp.eq.s32.totalorder %s26, 1
      %p226 = por %p224, %p225
      %p227 = scmp.ne.s32.totalorder %s216, %s217
      %p228 = scmp.eq.s32.totalorder %s26, 0
      %p229 = por %p227, %p228
      %p230 = scmp.ne.s32.totalorder %s216, %s217
      %p231 = scmp.eq.s32.totalorder %s27, 1
      %p232 = por %p230, %p231
      %p234 = scmp.ne.s32.totalorder %s217, %s233
      %p235 = scmp.eq.s32.totalorder %s27, 0
      %p236 = por %p234, %p235
      %s237 = ssub.s32 %s28, %s40
      %s238 = ssub.s32 %s29, %s36
      %s239 = sor.u32 %s237, %s238
      %p240 = scmp.eq.s32.totalorder %s239, 0
      %s242 = sadd.s32 %s241, 1
      %s243 = scalar_select %p240, %s241, %s242
      %p246 = pneg %p240
      %p247 = scmp.eq.s32.totalorder %s21, 1
      %p248 = por %p246, %p247
      %p249 = scmp.ne.s32.totalorder %s241, %s244
      %p250 = scmp.eq.s32.totalorder %s21, 0
      %p251 = por %p249, %p250
      %p252 = scmp.ne.s32.totalorder %s241, %s244
      %p253 = scmp.eq.s32.totalorder %s26, 1
      %p254 = por %p252, %p253
      %p255 = scmp.ne.s32.totalorder %s244, %s245
      %p256 = scmp.eq.s32.totalorder %s26, 0
      %p257 = por %p255, %p256
      %p258 = scmp.ne.s32.totalorder %s244, %s245
      %p259 = scmp.eq.s32.totalorder %s27, 1
      %p260 = por %p258, %p259
      %p262 = scmp.ne.s32.totalorder %s245, %s261
      %p263 = scmp.eq.s32.totalorder %s27, 0
      %p264 = por %p262, %p263
      %p265 = scmp.le.s32.totalorder 1, %s21
      %p266 = scmp.lt.s32.totalorder %s21, 3
      %p267 = pnand %p265, %p266
      %p268 = pneg %p267
      // Predicated region
      $region9: #{tpu_custom_call.1} parent=5 // pred_check
        _
      $region10: #{tpu_custom_call.1} parent=5 // pred_check_branch
        %270 = sbr.rel (%p267) target = $region12
      $region11: #{tpu_custom_call.1} parent=5 // pred_region
        %s271 = ssub.s32 %s21, 1
        // Predicated region
        $region13: #{tpu_custom_call.1} parent=11 // pred_check
          %p272 = pneg %p110
        $region14: #{tpu_custom_call.1} parent=11 // pred_check_branch
          %274 = sbr.rel (%p272) target = $region16
        $region15: #{tpu_custom_call.1} parent=11 // pred_region
          _
        $region16: #{tpu_custom_call.1} parent=11 // pred_fallthru
          _
        // Predicated region
        $region17: #{tpu_custom_call.1} parent=11 // pred_check
          %p275 = pneg %p131
        $region18: #{tpu_custom_call.1} parent=11 // pred_check_branch
          %277 = sbr.rel (%p275) target = $region20
        $region19: #{tpu_custom_call.1} parent=11 // pred_region
          _
        $region20: #{tpu_custom_call.1} parent=11 // pred_fallthru
          _
        // Predicated region
        $region21: #{tpu_custom_call.1} parent=11 // pred_check
          %p278 = pneg %p152
        $region22: #{tpu_custom_call.1} parent=11 // pred_check_branch
          %280 = sbr.rel (%p278) target = $region24
        $region23: #{tpu_custom_call.1} parent=11 // pred_region
          _
        $region24: #{tpu_custom_call.1} parent=11 // pred_fallthru
          _
        // Predicated region
        $region25: #{tpu_custom_call.1} parent=11 // pred_check
          %p281 = pneg %p173
        $region26: #{tpu_custom_call.1} parent=11 // pred_check_branch
          %283 = sbr.rel (%p281) target = $region28
        $region27: #{tpu_custom_call.1} parent=11 // pred_region
          _
        $region28: #{tpu_custom_call.1} parent=11 // pred_fallthru
          _
      $region12: #{tpu_custom_call.1} parent=5 // pred_fallthru
        _
      %p284 = scmp.lt.s32.totalorder %s21, 2
      // Predicated region
      $region29: #{tpu_custom_call.1} parent=5 // pred_check
        %p285 = pneg %p284
      $region30: #{tpu_custom_call.1} parent=5 // pred_check_branch
        %287 = sbr.rel (%p285) target = $region32
      $region31: #{tpu_custom_call.1} parent=5 // pred_region
        // Predicated region
        $region33: #{tpu_custom_call.1} parent=31 // pred_check
          %p288 = pneg %p55
        $region34: #{tpu_custom_call.1} parent=31 // pred_check_branch
          %290 = sbr.rel (%p288) target = $region36
        $region35: #{tpu_custom_call.1} parent=31 // pred_region
          %s291 = sand.u32 %s45, 1
          %s292 = scalar_lea.sflag [#allocation3], %s291
          %s293 = sand.u32 %s45, 1
          %s294 = smul.addr %s293, 32
          %s295 = scalar_lea.vmem [#allocation2], %s294
          %s296 = smul.u32 4, %s29
          %298 = vsyncadd %s292, 0
          %s299 = smul.addr %s28, 4
          %s300 = sadd.s32 %s296, %s299
          %s301 = smul.addr %s300, 8
          %s302 = scalar_lea.hbm %s0, %s301
          %s303 = sshll.u32 %s302, 4
          %s304 = int_to_ptr.hbm [resolvable:$true] %s303
          %s305 = sshll.u32 %s295, 4
          %s306 = int_to_ptr.vmem [resolvable:$true] %s305
          %311 = dma.hbm_to_vmem [thread:$0]  %s304, 512, %s306, %s292, 128, 128, 8
        $region36: #{tpu_custom_call.1} parent=31 // pred_fallthru
          _
        // Predicated region
        $region37: #{tpu_custom_call.1} parent=31 // pred_check
          %p312 = pneg %p83
        $region38: #{tpu_custom_call.1} parent=31 // pred_check_branch
          %314 = sbr.rel (%p312) target = $region40
        $region39: #{tpu_custom_call.1} parent=31 // pred_region
          %s315 = sand.u32 %s73, 1
          %s316 = scalar_lea.sflag [#allocation5], %s315
          %s317 = sand.u32 %s73, 1
          %s318 = smul.addr %s317, 32
          %s319 = scalar_lea.vmem [#allocation4], %s318
          %s320 = smul.u32 4, %s29
          %322 = vsyncadd %s316, 0
          %s323 = smul.addr %s28, 4
          %s324 = sadd.s32 %s320, %s323
          %s325 = smul.addr %s324, 8
          %s326 = scalar_lea.hbm %s1, %s325
          %s327 = sshll.u32 %s326, 4
          %s328 = int_to_ptr.hbm [resolvable:$true] %s327
          %s329 = sshll.u32 %s319, 4
          %s330 = int_to_ptr.vmem [resolvable:$true] %s329
          %335 = dma.hbm_to_vmem [thread:$0]  %s328, 512, %s330, %s316, 128, 128, 8
        $region40: #{tpu_custom_call.1} parent=31 // pred_fallthru
          _
      $region32: #{tpu_custom_call.1} parent=5 // pred_fallthru
        _
      %p336 = scmp.le.s32.totalorder 1, %s21
      %p337 = scmp.lt.s32.totalorder %s21, 3
      %p338 = pnand %p336, %p337
      %p339 = pneg %p338
      // Predicated region
      $region41: #{tpu_custom_call.1} parent=5 // pred_check
        _
      $region42: #{tpu_custom_call.1} parent=5 // pred_check_branch
        %341 = sbr.rel (%p338) target = $region44
      $region43: #{tpu_custom_call.1} parent=5 // pred_region
        %s342 = ssub.s32 %s21, 1
        %s343 = sand.u32 %s48, 1
        %s344 = scalar_lea.sflag [#allocation3], %s343
        %s345 = sand.u32 %s48, 1
        %s346 = smul.addr %s345, 32
        %s347 = scalar_lea.vmem [#allocation2], %s346
        // Predicated region
        $region45: #{tpu_custom_call.1} parent=43 // pred_check
          %p348 = pneg %p61
        $region46: #{tpu_custom_call.1} parent=43 // pred_check_branch
          %350 = sbr.rel (%p348) target = $region48
        $region47: #{tpu_custom_call.1} parent=43 // pred_region
          %352 = dma.done %s344, 512
        $region48: #{tpu_custom_call.1} parent=43 // pred_fallthru
          _
        %s353 = sand.u32 %s76, 1
        %s354 = scalar_lea.sflag [#allocation5], %s353
        %s355 = sand.u32 %s76, 1
        %s356 = smul.addr %s355, 32
        %s357 = scalar_lea.vmem [#allocation4], %s356
        // Predicated region
        $region49: #{tpu_custom_call.1} parent=43 // pred_check
          %p358 = pneg %p89
        $region50: #{tpu_custom_call.1} parent=43 // pred_check_branch
          %360 = sbr.rel (%p358) target = $region52
        $region51: #{tpu_custom_call.1} parent=43 // pred_region
          %362 = dma.done %s354, 512
        $region52: #{tpu_custom_call.1} parent=43 // pred_fallthru
          _
        %s363 = sand.u32 %s48, 1
        %s364 = scalar_lea.sflag [#allocation3], %s363
        %s365 = sand.u32 %s48, 1
        %s366 = smul.addr %s365, 32
        %s367 = scalar_lea.vmem [#allocation2], %s366
        %p368 = pneg %p61
        %p369 = pneg %p58
        %s370 = sand.u32 %s76, 1
        %s371 = scalar_lea.sflag [#allocation5], %s370
        %s372 = sand.u32 %s76, 1
        %s373 = smul.addr %s372, 32
        %s374 = scalar_lea.vmem [#allocation4], %s373
        %p375 = pneg %p89
        %p376 = pneg %p86
        %p377 = pneg %p110
        %p378 = pneg %p107
        %p379 = pneg %p131
        %p380 = pneg %p128
        %p381 = pneg %p152
        %p382 = pneg %p149
        %p383 = pneg %p173
        %p384 = pneg %p170
        %p385 = pneg %p201
        %p386 = pneg %p198
        %s387 = smul.u32 4, %s31
        %p388 = scmp.lt.s32.totalorder %s30, 1
        %s389 = scalar_select %p388, %s30, 1
        %p390 = scmp.lt.s32.totalorder %s387, 3
        %s391 = scalar_select %p390, %s387, 3
        %s392 = smul.addr %s389, 8
        %s393 = sadd.s32 %s391, %s392
        %s394 = smul.addr %s393, 4
        %s395 = scalar_lea.vmem %s6, %s394
        %p396 = pneg %p229
        %p397 = pneg %p226
        %s398 = smul.u32 4, %s31
        %p399 = scmp.lt.s32.totalorder %s30, 1
        %s400 = scalar_select %p399, %s30, 1
        %p401 = scmp.lt.s32.totalorder %s398, 3
        %s402 = scalar_select %p401, %s398, 3
        %s403 = smul.addr %s400, 8
        %s404 = sadd.s32 %s402, %s403
        %s405 = smul.addr %s404, 4
        %s406 = scalar_lea.vmem %s7, %s405
        %p407 = pneg %p257
        %p408 = pneg %p254
        %s409 = smul.u32 4, %s31
        %p410 = scmp.lt.s32.totalorder %s30, 1
        %s411 = scalar_select %p410, %s30, 1
        %p412 = scmp.lt.s32.totalorder %s409, 3
        %s413 = scalar_select %p412, %s409, 3
        %s414 = smul.addr %s411, 8
        %s415 = sadd.s32 %s413, %s414
        %s416 = smul.addr %s415, 4
        %s417 = scalar_lea.vmem %s8, %s416
        %s418 = smul.u32 4, %s31
        %s419 = smul.u32 4, %s31
        %s420 = smul.u32 4, %s31
        %p421 = scmp.lt.s32.totalorder %s30, 1
        %s422 = scalar_select %p421, %s30, 1
        %p423 = scmp.lt.s32.totalorder %s420, 3
        %s424 = scalar_select %p423, %s420, 3
        %s425 = smul.addr %s422, 8
        %s426 = sadd.s32 %s424, %s425
        %s427 = smul.addr %s426, 4
        %s428 = scalar_lea.vmem %s6, %s427
        %s429 = smul.u32 4, %s31
        %s430 = smul.u32 4, %s31
        %p431 = scmp.lt.s32.totalorder %s30, 1
        %s432 = scalar_select %p431, %s30, 1
        %p433 = scmp.lt.s32.totalorder %s430, 3
        %s434 = scalar_select %p433, %s430, 3
        %s435 = smul.addr %s432, 8
        %s436 = sadd.s32 %s434, %s435
        %s437 = smul.addr %s436, 4
        %s438 = scalar_lea.vmem %s7, %s437
        %s439 = smul.u32 4, %s31
        %s440 = smul.u32 4, %s31
        %p441 = scmp.lt.s32.totalorder %s30, 1
        %s442 = scalar_select %p441, %s30, 1
        %p443 = scmp.lt.s32.totalorder %s440, 3
        %s444 = scalar_select %p443, %s440, 3
        %s445 = smul.addr %s442, 8
        %s446 = sadd.s32 %s444, %s445
        %s447 = smul.addr %s446, 4
        %s448 = scalar_lea.vmem %s8, %s447
        %s449 = smul.u32 4, %s31
        %v451 = vld [vmem:[%s347] sm:$0xff]
        %v452 = vld [vmem:[%s347 + $0x8] sm:$0xff]
        %v453 = vld [vmem:[%s347 + $0x10] sm:$0xff]
        %v454 = vld [vmem:[%s347 + $0x18] sm:$0xff]
        %v455 = vpack.c.bf16 %v452, %v451
        %v456 = vpack.c.bf16 %v454, %v453
        %v457 = vld [vmem:[%s357] sm:$0xff]
        %v458 = vld [vmem:[%s357 + $0x8] sm:$0xff]
        %v459 = vld [vmem:[%s357 + $0x10] sm:$0xff]
        %v460 = vld [vmem:[%s357 + $0x18] sm:$0xff]
        %v461 = vpack.c.bf16 %v458, %v457
        %v462 = vpack.c.bf16 %v460, %v459
        %v463 = vld [vmem:[%s2] sm:$0xf]
        %v464 = vld [vmem:[%s2 + $0x4] sm:$0xf]
        %v465 = vld [vmem:[%s2 + $0x8] sm:$0xf]
        %v466 = vld [vmem:[%s2 + $0xc] sm:$0xf]
        %v467 = vld [vmem:[%s5] sm:$0x1]
        %v468 = vperm.slane %v467, 0
        %v473 = vunpack.c.l.b16 %v463
        %v474 = vunpack.c.l.b16 %v464
        %v475 = vunpack.c.l.b16 %v465
        %v476 = vunpack.c.l.b16 %v466
        %v477 = vpack.c.b16 %v474, %v473
        %v478 = vpack.c.b16 %v476, %v475
        %vm481 = vcmask 261120
        %v483 = vsel %vm481, %v455, 0
        %v486 = vsel %vm481, %v456, 0
        %488 = vmatpush.bf16.msra.mxu0 0
        %489 = vmatpush.bf16.msra.mxu0 0
        %490 = vmatpush.bf16.msra.mxu0 0
        %491 = vmatpush.bf16.msra.mxu0 0
        %492 = vmatpush.bf16.msra.mxu0 0
        %493 = vmatpush.bf16.msra.mxu0 0
        %494 = vmatpush.bf16.msra.mxu0 %v478
        %495 = vmatpush.bf16.msra.mxu0 %v477
        %496 = vmatmul.bf16.gmra.mxu0 %v483
        %v497 = vpop.f32.mrf.mxu0
        %v498 = vadd.f32 %v468, %v497
        %v499 = vpop.f32.mrf.mxu0
        %v500 = vadd.f32 %v468, %v499
        %501 = vmatmul.bf16.gmra.mxu0 %v486
        %v502 = vpop.f32.mrf.mxu0
        %v503 = vadd.f32 %v468, %v502
        %v504 = vpop.f32.mrf.mxu0
        %v505 = vadd.f32 %v468, %v504
        %506 = vdwg.mxu0
        %v507 = vmul.f32 %v498, 0.35355338
        %v508 = vmul.f32 %v500, 0.35355338
        %v509 = vmul.f32 %v503, 0.35355338
        %v510 = vmul.f32 %v505, 0.35355338
        %v511 = vld [vmem:[%s3] sm:$0xf]
        %v512 = vld [vmem:[%s3 + $0x4] sm:$0xf]
        %v513 = vld [vmem:[%s3 + $0x8] sm:$0xf]
        %v514 = vld [vmem:[%s3 + $0xc] sm:$0xf]
        %v515 = vld [vmem:[%s5 + $0x1] sm:$0x1]
        %v516 = vperm.slane %v515, 0
        %v521 = vunpack.c.l.b16 %v511
        %v522 = vunpack.c.l.b16 %v512
        %v523 = vunpack.c.l.b16 %v513
        %v524 = vunpack.c.l.b16 %v514
        %v525 = vpack.c.b16 %v522, %v521
        %v526 = vpack.c.b16 %v524, %v523
        %529 = vmatpush.bf16.msra.mxu0 0
        %530 = vmatpush.bf16.msra.mxu0 0
        %531 = vmatpush.bf16.msra.mxu0 0
        %532 = vmatpush.bf16.msra.mxu0 0
        %533 = vmatpush.bf16.msra.mxu0 0
        %534 = vmatpush.bf16.msra.mxu0 0
        %535 = vmatpush.bf16.msra.mxu0 %v526
        %536 = vmatpush.bf16.msra.mxu0 %v525
        %537 = vmatmul.bf16.gmra.mxu0 %v483
        %v538 = vpop.f32.mrf.mxu0
        %v539 = vadd.f32 %v516, %v538
        %v540 = vpop.f32.mrf.mxu0
        %v541 = vadd.f32 %v516, %v540
        %542 = vmatmul.bf16.gmra.mxu0 %v486
        %v543 = vpop.f32.mrf.mxu0
        %v544 = vadd.f32 %v516, %v543
        %v545 = vpop.f32.mrf.mxu0
        %v546 = vadd.f32 %v516, %v545
        %547 = vdwg.mxu0
        %v548 = vld [vmem:[%s4] sm:$0xf]
        %v549 = vld [vmem:[%s4 + $0x4] sm:$0xf]
        %v550 = vld [vmem:[%s4 + $0x8] sm:$0xf]
        %v551 = vld [vmem:[%s4 + $0xc] sm:$0xf]
        %v552 = vld [vmem:[%s5 + $0x2] sm:$0x1]
        %v553 = vperm.slane %v552, 0
        %v558 = vunpack.c.l.b16 %v548
        %v559 = vunpack.c.l.b16 %v549
        %v560 = vunpack.c.l.b16 %v550
        %v561 = vunpack.c.l.b16 %v551
        %v562 = vpack.c.b16 %v559, %v558
        %v563 = vpack.c.b16 %v561, %v560
        %v567 = vsel %vm481, %v461, 0
        %v570 = vsel %vm481, %v462, 0
        %572 = vmatpush.bf16.msra.mxu0 0
        %573 = vmatpush.bf16.msra.mxu0 0
        %574 = vmatpush.bf16.msra.mxu0 0
        %575 = vmatpush.bf16.msra.mxu0 0
        %576 = vmatpush.bf16.msra.mxu0 0
        %577 = vmatpush.bf16.msra.mxu0 0
        %578 = vmatpush.bf16.msra.mxu0 %v563
        %579 = vmatpush.bf16.msra.mxu0 %v562
        %580 = vmatmul.bf16.gmra.mxu0 %v567
        %v581 = vpop.f32.mrf.mxu0
        %v582 = vadd.f32 %v553, %v581
        %v583 = vpop.f32.mrf.mxu0
        %v584 = vadd.f32 %v553, %v583
        %585 = vmatmul.bf16.gmra.mxu0 %v570
        %v586 = vpop.f32.mrf.mxu0
        %v587 = vadd.f32 %v553, %v586
        %v588 = vpop.f32.mrf.mxu0
        %v589 = vadd.f32 %v553, %v588
        %590 = vdwg.mxu0
        %v591 = vpack.c.bf16 %v507, %v507
        %v592 = vpack.c.bf16 %v508, %v508
        %v593 = vpack.c.bf16 %v509, %v509
        %v594 = vpack.c.bf16 %v510, %v510
        %vm595 = vcmask 60416
        %596 = vst.msk [vmem:[%s428] sm:$0xf] %vm595, %v591
        %597 = vst.msk [vmem:[%s428 + $0x4] sm:$0xf] %vm595, %v592
        %598 = vst.msk [vmem:[%s428 + $0x8] sm:$0xf] %vm595, %v593
        %599 = vst.msk [vmem:[%s428 + $0xc] sm:$0xf] %vm595, %v594
        %v600 = vpack.c.bf16 %v539, %v539
        %v601 = vpack.c.bf16 %v541, %v541
        %v602 = vpack.c.bf16 %v544, %v544
        %v603 = vpack.c.bf16 %v546, %v546
        %604 = vst.msk [vmem:[%s438] sm:$0xf] %vm595, %v600
        %605 = vst.msk [vmem:[%s438 + $0x4] sm:$0xf] %vm595, %v601
        %606 = vst.msk [vmem:[%s438 + $0x8] sm:$0xf] %vm595, %v602
        %607 = vst.msk [vmem:[%s438 + $0xc] sm:$0xf] %vm595, %v603
        %v608 = vpack.c.bf16 %v582, %v582
        %v609 = vpack.c.bf16 %v584, %v584
        %v610 = vpack.c.bf16 %v587, %v587
        %v611 = vpack.c.bf16 %v589, %v589
        %612 = vst.msk [vmem:[%s448] sm:$0xf] %vm595, %v608
        %613 = vst.msk [vmem:[%s448 + $0x4] sm:$0xf] %vm595, %v609
        %614 = vst.msk [vmem:[%s448 + $0x8] sm:$0xf] %vm595, %v610
        %615 = vst.msk [vmem:[%s448 + $0xc] sm:$0xf] %vm595, %v611
        %620 = vrot.lane.b32.xlu0 %v591, 120
        %v621 = vpop.permute.xlu0 %620
        %622 = vrot.lane.b32.xlu0 %v592, 120
        %v623 = vpop.permute.xlu0 %622
        %624 = vrot.lane.b32.xlu0 %v593, 120
        %v625 = vpop.permute.xlu0 %624
        %626 = vrot.lane.b32.xlu0 %v594, 120
        %v627 = vpop.permute.xlu0 %626
        %s632 = scalar_lea.vmem %s428, 16
        %633 = vst.msk [vmem:[%s632] sm:$0xf] %vm595, %v621
        %634 = vst.msk [vmem:[%s632 + $0x4] sm:$0xf] %vm595, %v623
        %635 = vst.msk [vmem:[%s632 + $0x8] sm:$0xf] %vm595, %v625
        %636 = vst.msk [vmem:[%s632 + $0xc] sm:$0xf] %vm595, %v627
        %641 = vrot.lane.b32.xlu0 %v600, 120
        %v642 = vpop.permute.xlu0 %641
        %643 = vrot.lane.b32.xlu0 %v601, 120
        %v644 = vpop.permute.xlu0 %643
        %645 = vrot.lane.b32.xlu0 %v602, 120
        %v646 = vpop.permute.xlu0 %645
        %647 = vrot.lane.b32.xlu0 %v603, 120
        %v648 = vpop.permute.xlu0 %647
        %s653 = scalar_lea.vmem %s438, 16
        %654 = vst.msk [vmem:[%s653] sm:$0xf] %vm595, %v642
        %655 = vst.msk [vmem:[%s653 + $0x4] sm:$0xf] %vm595, %v644
        %656 = vst.msk [vmem:[%s653 + $0x8] sm:$0xf] %vm595, %v646
        %657 = vst.msk [vmem:[%s653 + $0xc] sm:$0xf] %vm595, %v648
        %662 = vrot.lane.b32.xlu0 %v608, 120
        %v663 = vpop.permute.xlu0 %662
        %664 = vrot.lane.b32.xlu0 %v609, 120
        %v665 = vpop.permute.xlu0 %664
        %666 = vrot.lane.b32.xlu0 %v610, 120
        %v667 = vpop.permute.xlu0 %666
        %668 = vrot.lane.b32.xlu0 %v611, 120
        %v669 = vpop.permute.xlu0 %668
        %s674 = scalar_lea.vmem %s448, 16
        %675 = vst.msk [vmem:[%s674] sm:$0xf] %vm595, %v663
        %676 = vst.msk [vmem:[%s674 + $0x4] sm:$0xf] %vm595, %v665
        %677 = vst.msk [vmem:[%s674 + $0x8] sm:$0xf] %vm595, %v667
        %678 = vst.msk [vmem:[%s674 + $0xc] sm:$0xf] %vm595, %v669
        %s679 = smul.u32 4, %s31
        %p680 = scmp.lt.s32.totalorder %s30, 1
        %s681 = scalar_select %p680, %s30, 1
        %p682 = scmp.lt.s32.totalorder %s679, 3
        %s683 = scalar_select %p682, %s679, 3
        %s684 = smul.addr %s681, 8
        %s685 = sadd.s32 %s683, %s684
        %s686 = smul.addr %s685, 4
        %s687 = scalar_lea.vmem %s6, %s686
        %s688 = smul.u32 4, %s31
        %p689 = scmp.lt.s32.totalorder %s30, 1
        %s690 = scalar_select %p689, %s30, 1
        %p691 = scmp.lt.s32.totalorder %s688, 3
        %s692 = scalar_select %p691, %s688, 3
        %s693 = smul.addr %s690, 8
        %s694 = sadd.s32 %s692, %s693
        %s695 = smul.addr %s694, 4
        %s696 = scalar_lea.vmem %s7, %s695
        %s697 = smul.u32 4, %s31
        %p698 = scmp.lt.s32.totalorder %s30, 1
        %s699 = scalar_select %p698, %s30, 1
        %p700 = scmp.lt.s32.totalorder %s697, 3
        %s701 = scalar_select %p700, %s697, 3
        %s702 = smul.addr %s699, 8
        %s703 = sadd.s32 %s701, %s702
        %s704 = smul.addr %s703, 4
        %s705 = scalar_lea.vmem %s8, %s704
        // Predicated region
        $region53: #{tpu_custom_call.1} parent=43 // pred_check
          %p706 = pneg %p198
        $region54: #{tpu_custom_call.1} parent=43 // pred_check_branch
          %708 = sbr.rel (%p706) target = $region56
        $region55: #{tpu_custom_call.1} parent=43 // pred_region
          %s709 = smul.u32 4, %s31
        $region56: #{tpu_custom_call.1} parent=43 // pred_fallthru
          _
        // Predicated region
        $region57: #{tpu_custom_call.1} parent=43 // pred_check
          %p710 = pneg %p226
        $region58: #{tpu_custom_call.1} parent=43 // pred_check_branch
          %712 = sbr.rel (%p710) target = $region60
        $region59: #{tpu_custom_call.1} parent=43 // pred_region
          %s713 = smul.u32 4, %s31
        $region60: #{tpu_custom_call.1} parent=43 // pred_fallthru
          _
        // Predicated region
        $region61: #{tpu_custom_call.1} parent=43 // pred_check
          %p714 = pneg %p254
        $region62: #{tpu_custom_call.1} parent=43 // pred_check_branch
          %716 = sbr.rel (%p714) target = $region64
        $region63: #{tpu_custom_call.1} parent=43 // pred_region
          %s717 = smul.u32 4, %s31
        $region64: #{tpu_custom_call.1} parent=43 // pred_fallthru
          _
      $region44: #{tpu_custom_call.1} parent=5 // pred_fallthru
        _
      %p718 = scmp.le.s32.totalorder 2, %s21
      // Predicated region
      $region65: #{tpu_custom_call.1} parent=5 // pred_check
        %p719 = pneg %p718
      $region66: #{tpu_custom_call.1} parent=5 // pred_check_branch
        %721 = sbr.rel (%p719) target = $region68
      $region67: #{tpu_custom_call.1} parent=5 // pred_region
        %s722 = ssub.s32 %s21, 2
        // Predicated region
        $region69: #{tpu_custom_call.1} parent=67 // pred_check
          %p723 = pneg %p204
        $region70: #{tpu_custom_call.1} parent=67 // pred_check_branch
          %725 = sbr.rel (%p723) target = $region72
        $region71: #{tpu_custom_call.1} parent=67 // pred_region
          %s726 = smul.u32 4, %s33
          %p727 = scmp.lt.s32.totalorder %s32, 1
          %s728 = scalar_select %p727, %s32, 1
          %p729 = scmp.lt.s32.totalorder %s726, 3
          %s730 = scalar_select %p729, %s726, 3
          %s731 = smul.addr %s728, 8
          %s732 = sadd.s32 %s730, %s731
          %s733 = smul.addr %s732, 4
          %s734 = scalar_lea.vmem %s6, %s733
        $region72: #{tpu_custom_call.1} parent=67 // pred_fallthru
          _
        // Predicated region
        $region73: #{tpu_custom_call.1} parent=67 // pred_check
          %p735 = pneg %p232
        $region74: #{tpu_custom_call.1} parent=67 // pred_check_branch
          %737 = sbr.rel (%p735) target = $region76
        $region75: #{tpu_custom_call.1} parent=67 // pred_region
          %s738 = smul.u32 4, %s33
          %p739 = scmp.lt.s32.totalorder %s32, 1
          %s740 = scalar_select %p739, %s32, 1
          %p741 = scmp.lt.s32.totalorder %s738, 3
          %s742 = scalar_select %p741, %s738, 3
          %s743 = smul.addr %s740, 8
          %s744 = sadd.s32 %s742, %s743
          %s745 = smul.addr %s744, 4
          %s746 = scalar_lea.vmem %s7, %s745
        $region76: #{tpu_custom_call.1} parent=67 // pred_fallthru
          _
        // Predicated region
        $region77: #{tpu_custom_call.1} parent=67 // pred_check
          %p747 = pneg %p260
        $region78: #{tpu_custom_call.1} parent=67 // pred_check_branch
          %749 = sbr.rel (%p747) target = $region80
        $region79: #{tpu_custom_call.1} parent=67 // pred_region
          %s750 = smul.u32 4, %s33
          %p751 = scmp.lt.s32.totalorder %s32, 1
          %s752 = scalar_select %p751, %s32, 1
          %p753 = scmp.lt.s32.totalorder %s750, 3
          %s754 = scalar_select %p753, %s750, 3
          %s755 = smul.addr %s752, 8
          %s756 = sadd.s32 %s754, %s755
          %s757 = smul.addr %s756, 4
          %s758 = scalar_lea.vmem %s8, %s757
        $region80: #{tpu_custom_call.1} parent=67 // pred_fallthru
          _
      $region68: #{tpu_custom_call.1} parent=5 // pred_fallthru
        _
    $region6: #{tpu_custom_call.1} parent=1 // loop_footer
      %s25 = sadd.s32 1, %s21
    $region7: #{tpu_custom_call.1} parent=1 // loop_footer_branch
      %20 = sbr.rel target = $region3
    $region8: #{tpu_custom_call.1} parent=1 // loop_exit
      _
    %759 = vsyncpa [#allocation3], 1
    %s760 = scalar_lea.sflag [#allocation3], 1
    %761 = vsyncpa %s760, 1
    %762 = vsyncpa [#allocation5], 1
    %s763 = scalar_lea.sflag [#allocation5], 1
    %764 = vsyncpa %s763, 1

// kernel: tpu_custom_call.1
$region0: #{tpu_custom_call.1}
  #allocation0 [shape = 'u32[]', space=smem, size = 0x4, offset = 0x4, fixed_abs, tag = 'smem constant byte address 0x4 - core index']
  #allocation1 [shape = 'u32[72,128]{1,0:T(1,128)}', space=vmem, size = 0x9000, scoped, tag = 'internal scratch']
  %s0 = inlined_call_operand.hbm [shape: f32[2,32,32], index: 0, kind: input, shape index: {}]
  %s1 = inlined_call_operand.hbm [shape: f32[2,32,32], index: 1, kind: input, shape index: {}]
  %s2 = inlined_call_operand.vmem [shape: bf16[32,16], index: 2, kind: input, shape index: {}]
  %s3 = inlined_call_operand.vmem [shape: bf16[32,16], index: 3, kind: input, shape index: {}]
  %s4 = inlined_call_operand.vmem [shape: bf16[32,16], index: 4, kind: input, shape index: {}]
  %s5 = inlined_call_operand.vmem [shape: f32[3,16], index: 5, kind: input, shape index: {}]
  %s6 = inlined_call_operand.vmem [shape: bf16[2,2,32,8], index: 6, kind: output, shape index: {0}]
  %s7 = inlined_call_operand.vmem [shape: bf16[2,2,32,8], index: 7, kind: output, shape index: {1}]
  %s8 = inlined_call_operand.vmem [shape: bf16[2,2,32,8], index: 8, kind: output, shape index: {2}]
  %9 = xla_tuple %s6, %s7, %s8
  %s10 = sld [smem:[#allocation0]]
  $region81: #{tpu_custom_call.1} parent=0
    _
  %s12 = ssub.s32 1, %s10
  %s13 = scalar_select 0, %s12, %s10
  $region1: #{tpu_custom_call.1} parent=0
    #allocation2 [shape = 'u8[32768]{0}', space=vmem, size = 0x8000, scoped, tag = 'input window, operand 0']
    #allocation3 [shape = 's32[2]{0}', space=sflag, size = 0x8, scoped, tag = 'scoped memory for tpu_custom_call.1']
    #allocation4 [shape = 'u8[32768]{0}', space=vmem, size = 0x8000, scoped, tag = 'input window, operand 1']
    #allocation5 [shape = 's32[2]{0}', space=sflag, size = 0x8, scoped, tag = 'scoped memory for tpu_custom_call.1']
    %14 = vsyncpa [#allocation3], 0
    %s15 = scalar_lea.sflag [#allocation3], 1
    %16 = vsyncpa %s15, 0
    %17 = vsyncpa [#allocation5], 0
    %s18 = scalar_lea.sflag [#allocation5], 1
    %19 = vsyncpa %s18, 0
    loop: start=0, step=1, limit=4
    $region2: #{tpu_custom_call.1} parent=1 // loop_pre_header
      _
    $region3: #{tpu_custom_call.1} parent=1 // loop_header
      %s21 = sphi 0, %s25
      %p22 = scmp.ge.s32.totalorder %s21, 4
      %s28 = sphi 0, %s40
      %s29 = sphi 0, %s36
      %s30 = sphi 0, %s28
      %s31 = sphi 0, %s29
      %s32 = sphi 0, %s30
      %s33 = sphi 0, %s31
      %s45 = sphi 0, %s47
      %s48 = sphi 0, %s45
      %s49 = sphi 0, %s48
      %s65 = sphi 0, %s49
      %s73 = sphi 0, %s75
      %s76 = sphi 0, %s73
      %s77 = sphi 0, %s76
      %s93 = sphi 0, %s77
      %s97 = sphi 0, %s97
      %s99 = sphi 0, %s97
      %s100 = sphi 0, %s99
      %s114 = sphi 0, %s100
      %s118 = sphi 0, %s118
      %s120 = sphi 0, %s118
      %s121 = sphi 0, %s120
      %s135 = sphi 0, %s121
      %s139 = sphi 0, %s139
      %s141 = sphi 0, %s139
      %s142 = sphi 0, %s141
      %s156 = sphi 0, %s142
      %s160 = sphi 0, %s160
      %s162 = sphi 0, %s160
      %s163 = sphi 0, %s162
      %s177 = sphi 0, %s163
      %s185 = sphi 0, %s187
      %s188 = sphi 0, %s185
      %s189 = sphi 0, %s188
      %s205 = sphi 0, %s189
      %s213 = sphi 0, %s215
      %s216 = sphi 0, %s213
      %s217 = sphi 0, %s216
      %s233 = sphi 0, %s217
      %s241 = sphi 0, %s243
      %s244 = sphi 0, %s241
      %s245 = sphi 0, %s244
      %s261 = sphi 0, %s245
    $region4: #{tpu_custom_call.1} parent=1 // loop_header_branch
      %24 = sbr.rel (%p22) target = $region8
    $region5: #{tpu_custom_call.1} parent=1 // loop_body
      %s26 = ssub.s32 %s21, 1
      %s27 = ssub.s32 %s21, 2
      %s34 = sadd.s32 1, %s29
      %p35 = scmp.ge.s32.totalorder %s34, 1
      %s36 = scalar_select %p35, 0, %s34
      %s37 = sadd.s32 1, %s28
      %s38 = scalar_select %p35, %s37, %s28
      %p39 = scmp.ge.s32.totalorder %s38, 2
      %s40 = scalar_select %p39, 0, %s38
      %s41 = ssub.s32 %s28, %s40
      %s42 = ssub.s32 %s29, %s36
      %s43 = sor.u32 %s41, %s42
      %p44 = scmp.eq.s32.totalorder %s43, 0
      %s46 = sadd.s32 %s45, 1
      %s47 = scalar_select %p44, %s45, %s46
      %p50 = pneg %p44
      %p51 = scmp.eq.s32.totalorder %s21, 1
      %p52 = por %p50, %p51
      %p53 = scmp.ne.s32.totalorder %s45, %s48
      %p54 = scmp.eq.s32.totalorder %s21, 0
      %p55 = por %p53, %p54
      %p56 = scmp.ne.s32.totalorder %s45, %s48
      %p57 = scmp.eq.s32.totalorder %s26, 1
      %p58 = por %p56, %p57
      %p59 = scmp.ne.s32.totalorder %s48, %s49
      %p60 = scmp.eq.s32.totalorder %s26, 0
      %p61 = por %p59, %p60
      %p62 = scmp.ne.s32.totalorder %s48, %s49
      %p63 = scmp.eq.s32.totalorder %s27, 1
      %p64 = por %p62, %p63
      %p66 = scmp.ne.s32.totalorder %s49, %s65
      %p67 = scmp.eq.s32.totalorder %s27, 0
      %p68 = por %p66, %p67
      %s69 = ssub.s32 %s28, %s40
      %s70 = ssub.s32 %s29, %s36
      %s71 = sor.u32 %s69, %s70
      %p72 = scmp.eq.s32.totalorder %s71, 0
      %s74 = sadd.s32 %s73, 1
      %s75 = scalar_select %p72, %s73, %s74
      %p78 = pneg %p72
      %p79 = scmp.eq.s32.totalorder %s21, 1
      %p80 = por %p78, %p79
      %p81 = scmp.ne.s32.totalorder %s73, %s76
      %p82 = scmp.eq.s32.totalorder %s21, 0
      %p83 = por %p81, %p82
      %p84 = scmp.ne.s32.totalorder %s73, %s76
      %p85 = scmp.eq.s32.totalorder %s26, 1
      %p86 = por %p84, %p85
      %p87 = scmp.ne.s32.totalorder %s76, %s77
      %p88 = scmp.eq.s32.totalorder %s26, 0
      %p89 = por %p87, %p88
      %p90 = scmp.ne.s32.totalorder %s76, %s77
      %p91 = scmp.eq.s32.totalorder %s27, 1
      %p92 = por %p90, %p91
      %p94 = scmp.ne.s32.totalorder %s77, %s93
      %p95 = scmp.eq.s32.totalorder %s27, 0
      %p96 = por %p94, %p95
      %s98 = sadd.s32 %s97, 1
      %p101 = scmp.eq.s32.totalorder %s21, 1
      %p102 = scmp.ne.s32.totalorder %s97, %s99
      %p103 = scmp.eq.s32.totalorder %s21, 0
      %p104 = por %p102, %p103
      %p105 = scmp.ne.s32.totalorder %s97, %s99
      %p106 = scmp.eq.s32.totalorder %s26, 1
      %p107 = por %p105, %p106
      %p108 = scmp.ne.s32.totalorder %s99, %s100
      %p109 = scmp.eq.s32.totalorder %s26, 0
      %p110 = por %p108, %p109
      %p111 = scmp.ne.s32.totalorder %s99, %s100
      %p112 = scmp.eq.s32.totalorder %s27, 1
      %p113 = por %p111, %p112
      %p115 = scmp.ne.s32.totalorder %s100, %s114
      %p116 = scmp.eq.s32.totalorder %s27, 0
      %p117 = por %p115, %p116
      %s119 = sadd.s32 %s118, 1
      %p122 = scmp.eq.s32.totalorder %s21, 1
      %p123 = scmp.ne.s32.totalorder %s118, %s120
      %p124 = scmp.eq.s32.totalorder %s21, 0
      %p125 = por %p123, %p124
      %p126 = scmp.ne.s32.totalorder %s118, %s120
      %p127 = scmp.eq.s32.totalorder %s26, 1
      %p128 = por %p126, %p127
      %p129 = scmp.ne.s32.totalorder %s120, %s121
      %p130 = scmp.eq.s32.totalorder %s26, 0
      %p131 = por %p129, %p130
      %p132 = scmp.ne.s32.totalorder %s120, %s121
      %p133 = scmp.eq.s32.totalorder %s27, 1
      %p134 = por %p132, %p133
      %p136 = scmp.ne.s32.totalorder %s121, %s135
      %p137 = scmp.eq.s32.totalorder %s27, 0
      %p138 = por %p136, %p137
      %s140 = sadd.s32 %s139, 1
      %p143 = scmp.eq.s32.totalorder %s21, 1
      %p144 = scmp.ne.s32.totalorder %s139, %s141
      %p145 = scmp.eq.s32.totalorder %s21, 0
      %p146 = por %p144, %p145
      %p147 = scmp.ne.s32.totalorder %s139, %s141
      %p148 = scmp.eq.s32.totalorder %s26, 1
      %p149 = por %p147, %p148
      %p150 = scmp.ne.s32.totalorder %s141, %s142
      %p151 = scmp.eq.s32.totalorder %s26, 0
      %p152 = por %p150, %p151
      %p153 = scmp.ne.s32.totalorder %s141, %s142
      %p154 = scmp.eq.s32.totalorder %s27, 1
      %p155 = por %p153, %p154
      %p157 = scmp.ne.s32.totalorder %s142, %s156
      %p158 = scmp.eq.s32.totalorder %s27, 0
      %p159 = por %p157, %p158
      %s161 = sadd.s32 %s160, 1
      %p164 = scmp.eq.s32.totalorder %s21, 1
      %p165 = scmp.ne.s32.totalorder %s160, %s162
      %p166 = scmp.eq.s32.totalorder %s21, 0
      %p167 = por %p165, %p166
      %p168 = scmp.ne.s32.totalorder %s160, %s162
      %p169 = scmp.eq.s32.totalorder %s26, 1
      %p170 = por %p168, %p169
      %p171 = scmp.ne.s32.totalorder %s162, %s163
      %p172 = scmp.eq.s32.totalorder %s26, 0
      %p173 = por %p171, %p172
      %p174 = scmp.ne.s32.totalorder %s162, %s163
      %p175 = scmp.eq.s32.totalorder %s27, 1
      %p176 = por %p174, %p175
      %p178 = scmp.ne.s32.totalorder %s163, %s177
      %p179 = scmp.eq.s32.totalorder %s27, 0
      %p180 = por %p178, %p179
      %s181 = ssub.s32 %s28, %s40
      %s182 = ssub.s32 %s29, %s36
      %s183 = sor.u32 %s181, %s182
      %p184 = scmp.eq.s32.totalorder %s183, 0
      %s186 = sadd.s32 %s185, 1
      %s187 = scalar_select %p184, %s185, %s186
      %p190 = pneg %p184
      %p191 = scmp.eq.s32.totalorder %s21, 1
      %p192 = por %p190, %p191
      %p193 = scmp.ne.s32.totalorder %s185, %s188
      %p194 = scmp.eq.s32.totalorder %s21, 0
      %p195 = por %p193, %p194
      %p196 = scmp.ne.s32.totalorder %s185, %s188
      %p197 = scmp.eq.s32.totalorder %s26, 1
      %p198 = por %p196, %p197
      %p199 = scmp.ne.s32.totalorder %s188, %s189
      %p200 = scmp.eq.s32.totalorder %s26, 0
      %p201 = por %p199, %p200
      %p202 = scmp.ne.s32.totalorder %s188, %s189
      %p203 = scmp.eq.s32.totalorder %s27, 1
      %p204 = por %p202, %p203
      %p206 = scmp.ne.s32.totalorder %s189, %s205
      %p207 = scmp.eq.s32.totalorder %s27, 0
      %p208 = por %p206, %p207
      %s209 = ssub.s32 %s28, %s40
      %s210 = ssub.s32 %s29, %s36
      %s211 = sor.u32 %s209, %s210
      %p212 = scmp.eq.s32.totalorder %s211, 0
      %s214 = sadd.s32 %s213, 1
      %s215 = scalar_select %p212, %s213, %s214
      %p218 = pneg %p212
      %p219 = scmp.eq.s32.totalorder %s21, 1
      %p220 = por %p218, %p219
      %p221 = scmp.ne.s32.totalorder %s213, %s216
      %p222 = scmp.eq.s32.totalorder %s21, 0
      %p223 = por %p221, %p222
      %p224 = scmp.ne.s32.totalorder %s213, %s216
      %p225 = scmp.eq.s32.totalorder %s26, 1
      %p226 = por %p224, %p225
      %p227 = scmp.ne.s32.totalorder %s216, %s217
      %p228 = scmp.eq.s32.totalorder %s26, 0
      %p229 = por %p227, %p228
      %p230 = scmp.ne.s32.totalorder %s216, %s217
      %p231 = scmp.eq.s32.totalorder %s27, 1
      %p232 = por %p230, %p231
      %p234 = scmp.ne.s32.totalorder %s217, %s233
      %p235 = scmp.eq.s32.totalorder %s27, 0
      %p236 = por %p234, %p235
      %s237 = ssub.s32 %s28, %s40
      %s238 = ssub.s32 %s29, %s36
      %s239 = sor.u32 %s237, %s238
      %p240 = scmp.eq.s32.totalorder %s239, 0
      %s242 = sadd.s32 %s241, 1
      %s243 = scalar_select %p240, %s241, %s242
      %p246 = pneg %p240
      %p247 = scmp.eq.s32.totalorder %s21, 1
      %p248 = por %p246, %p247
      %p249 = scmp.ne.s32.totalorder %s241, %s244
      %p250 = scmp.eq.s32.totalorder %s21, 0
      %p251 = por %p249, %p250
      %p252 = scmp.ne.s32.totalorder %s241, %s244
      %p253 = scmp.eq.s32.totalorder %s26, 1
      %p254 = por %p252, %p253
      %p255 = scmp.ne.s32.totalorder %s244, %s245
      %p256 = scmp.eq.s32.totalorder %s26, 0
      %p257 = por %p255, %p256
      %p258 = scmp.ne.s32.totalorder %s244, %s245
      %p259 = scmp.eq.s32.totalorder %s27, 1
      %p260 = por %p258, %p259
      %p262 = scmp.ne.s32.totalorder %s245, %s261
      %p263 = scmp.eq.s32.totalorder %s27, 0
      %p264 = por %p262, %p263
      %p265 = scmp.le.s32.totalorder 1, %s21
      %p266 = scmp.lt.s32.totalorder %s21, 3
      %p267 = pnand %p265, %p266
      %p268 = pneg %p267
      // Predicated region
      $region9: #{tpu_custom_call.1} parent=5 // pred_check
        _
      $region10: #{tpu_custom_call.1} parent=5 // pred_check_branch
        %270 = sbr.rel (%p267) target = $region12
      $region11: #{tpu_custom_call.1} parent=5 // pred_region
        %s271 = ssub.s32 %s21, 1
        // Predicated region
        $region13: #{tpu_custom_call.1} parent=11 // pred_check
          %p272 = pneg %p110
        $region14: #{tpu_custom_call.1} parent=11 // pred_check_branch
          %274 = sbr.rel (%p272) target = $region16
        $region15: #{tpu_custom_call.1} parent=11 // pred_region
          _
        $region16: #{tpu_custom_call.1} parent=11 // pred_fallthru
          _
        // Predicated region
        $region17: #{tpu_custom_call.1} parent=11 // pred_check
          %p275 = pneg %p131
        $region18: #{tpu_custom_call.1} parent=11 // pred_check_branch
          %277 = sbr.rel (%p275) target = $region20
        $region19: #{tpu_custom_call.1} parent=11 // pred_region
          _
        $region20: #{tpu_custom_call.1} parent=11 // pred_fallthru
          _
        // Predicated region
        $region21: #{tpu_custom_call.1} parent=11 // pred_check
          %p278 = pneg %p152
        $region22: #{tpu_custom_call.1} parent=11 // pred_check_branch
          %280 = sbr.rel (%p278) target = $region24
        $region23: #{tpu_custom_call.1} parent=11 // pred_region
          _
        $region24: #{tpu_custom_call.1} parent=11 // pred_fallthru
          _
        // Predicated region
        $region25: #{tpu_custom_call.1} parent=11 // pred_check
          %p281 = pneg %p173
        $region26: #{tpu_custom_call.1} parent=11 // pred_check_branch
          %283 = sbr.rel (%p281) target = $region28
        $region27: #{tpu_custom_call.1} parent=11 // pred_region
          _
        $region28: #{tpu_custom_call.1} parent=11 // pred_fallthru
          _
      $region12: #{tpu_custom_call.1} parent=5 // pred_fallthru
        _
      %p284 = scmp.lt.s32.totalorder %s21, 2
      // Predicated region
      $region29: #{tpu_custom_call.1} parent=5 // pred_check
        %p285 = pneg %p284
      $region30: #{tpu_custom_call.1} parent=5 // pred_check_branch
        %287 = sbr.rel (%p285) target = $region32
      $region31: #{tpu_custom_call.1} parent=5 // pred_region
        // Predicated region
        $region33: #{tpu_custom_call.1} parent=31 // pred_check
          %p288 = pneg %p55
        $region34: #{tpu_custom_call.1} parent=31 // pred_check_branch
          %290 = sbr.rel (%p288) target = $region36
        $region35: #{tpu_custom_call.1} parent=31 // pred_region
          %s291 = sand.u32 %s45, 1
          %s292 = scalar_lea.sflag [#allocation3], %s291
          %s293 = sand.u32 %s45, 1
          %s294 = smul.addr %s293, 32
          %s295 = scalar_lea.vmem [#allocation2], %s294
          %s296 = smul.u32 4, %s29
          %298 = vsyncadd %s292, 0
          %s299 = smul.addr %s28, 4
          %s300 = sadd.s32 %s296, %s299
          %s301 = smul.addr %s300, 8
          %s302 = scalar_lea.hbm %s0, %s301
          %s303 = sshll.u32 %s302, 4
          %s304 = int_to_ptr.hbm [resolvable:$true] %s303
          %s305 = sshll.u32 %s295, 4
          %s306 = int_to_ptr.vmem [resolvable:$true] %s305
          %311 = dma.hbm_to_vmem [thread:$0]  %s304, 512, %s306, %s292, 128, 128, 8
        $region36: #{tpu_custom_call.1} parent=31 // pred_fallthru
          _
        // Predicated region
        $region37: #{tpu_custom_call.1} parent=31 // pred_check
          %p312 = pneg %p83
        $region38: #{tpu_custom_call.1} parent=31 // pred_check_branch
          %314 = sbr.rel (%p312) target = $region40
        $region39: #{tpu_custom_call.1} parent=31 // pred_region
          %s315 = sand.u32 %s73, 1
          %s316 = scalar_lea.sflag [#allocation5], %s315
          %s317 = sand.u32 %s73, 1
          %s318 = smul.addr %s317, 32
          %s319 = scalar_lea.vmem [#allocation4], %s318
          %s320 = smul.u32 4, %s29
          %322 = vsyncadd %s316, 0
          %s323 = smul.addr %s28, 4
          %s324 = sadd.s32 %s320, %s323
          %s325 = smul.addr %s324, 8
          %s326 = scalar_lea.hbm %s1, %s325
          %s327 = sshll.u32 %s326, 4
          %s328 = int_to_ptr.hbm [resolvable:$true] %s327
          %s329 = sshll.u32 %s319, 4
          %s330 = int_to_ptr.vmem [resolvable:$true] %s329
          %335 = dma.hbm_to_vmem [thread:$0]  %s328, 512, %s330, %s316, 128, 128, 8
        $region40: #{tpu_custom_call.1} parent=31 // pred_fallthru
          _
      $region32: #{tpu_custom_call.1} parent=5 // pred_fallthru
        _
      %p336 = scmp.le.s32.totalorder 1, %s21
      %p337 = scmp.lt.s32.totalorder %s21, 3
      %p338 = pnand %p336, %p337
      %p339 = pneg %p338
      // Predicated region
      $region41: #{tpu_custom_call.1} parent=5 // pred_check
        _
      $region42: #{tpu_custom_call.1} parent=5 // pred_check_branch
        %341 = sbr.rel (%p338) target = $region44
      $region43: #{tpu_custom_call.1} parent=5 // pred_region
        %s342 = ssub.s32 %s21, 1
        %s343 = sand.u32 %s48, 1
        %s344 = scalar_lea.sflag [#allocation3], %s343
        %s345 = sand.u32 %s48, 1
        %s346 = smul.addr %s345, 32
        %s347 = scalar_lea.vmem [#allocation2], %s346
        // Predicated region
        $region45: #{tpu_custom_call.1} parent=43 // pred_check
          %p348 = pneg %p61
        $region46: #{tpu_custom_call.1} parent=43 // pred_check_branch
          %350 = sbr.rel (%p348) target = $region48
        $region47: #{tpu_custom_call.1} parent=43 // pred_region
          %352 = dma.done %s344, 512
        $region48: #{tpu_custom_call.1} parent=43 // pred_fallthru
          _
        %s353 = sand.u32 %s76, 1
        %s354 = scalar_lea.sflag [#allocation5], %s353
        %s355 = sand.u32 %s76, 1
        %s356 = smul.addr %s355, 32
        %s357 = scalar_lea.vmem [#allocation4], %s356
        // Predicated region
        $region49: #{tpu_custom_call.1} parent=43 // pred_check
          %p358 = pneg %p89
        $region50: #{tpu_custom_call.1} parent=43 // pred_check_branch
          %360 = sbr.rel (%p358) target = $region52
        $region51: #{tpu_custom_call.1} parent=43 // pred_region
          %362 = dma.done %s354, 512
        $region52: #{tpu_custom_call.1} parent=43 // pred_fallthru
          _
        %s363 = sand.u32 %s48, 1
        %s364 = scalar_lea.sflag [#allocation3], %s363
        %s365 = sand.u32 %s48, 1
        %s366 = smul.addr %s365, 32
        %s367 = scalar_lea.vmem [#allocation2], %s366
        %p368 = pneg %p61
        %p369 = pneg %p58
        %s370 = sand.u32 %s76, 1
        %s371 = scalar_lea.sflag [#allocation5], %s370
        %s372 = sand.u32 %s76, 1
        %s373 = smul.addr %s372, 32
        %s374 = scalar_lea.vmem [#allocation4], %s373
        %p375 = pneg %p89
        %p376 = pneg %p86
        %p377 = pneg %p110
        %p378 = pneg %p107
        %p379 = pneg %p131
        %p380 = pneg %p128
        %p381 = pneg %p152
        %p382 = pneg %p149
        %p383 = pneg %p173
        %p384 = pneg %p170
        %p385 = pneg %p201
        %p386 = pneg %p198
        %s387 = smul.u32 4, %s31
        %p388 = scmp.lt.s32.totalorder %s30, 1
        %s389 = scalar_select %p388, %s30, 1
        %p390 = scmp.lt.s32.totalorder %s387, 3
        %s391 = scalar_select %p390, %s387, 3
        %s392 = smul.addr %s389, 8
        %s393 = sadd.s32 %s391, %s392
        %s394 = smul.addr %s393, 4
        %s395 = scalar_lea.vmem %s6, %s394
        %p396 = pneg %p229
        %p397 = pneg %p226
        %s398 = smul.u32 4, %s31
        %p399 = scmp.lt.s32.totalorder %s30, 1
        %s400 = scalar_select %p399, %s30, 1
        %p401 = scmp.lt.s32.totalorder %s398, 3
        %s402 = scalar_select %p401, %s398, 3
        %s403 = smul.addr %s400, 8
        %s404 = sadd.s32 %s402, %s403
        %s405 = smul.addr %s404, 4
        %s406 = scalar_lea.vmem %s7, %s405
        %p407 = pneg %p257
        %p408 = pneg %p254
        %s409 = smul.u32 4, %s31
        %p410 = scmp.lt.s32.totalorder %s30, 1
        %s411 = scalar_select %p410, %s30, 1
        %p412 = scmp.lt.s32.totalorder %s409, 3
        %s413 = scalar_select %p412, %s409, 3
        %s414 = smul.addr %s411, 8
        %s415 = sadd.s32 %s413, %s414
        %s416 = smul.addr %s415, 4
        %s417 = scalar_lea.vmem %s8, %s416
        %s418 = smul.u32 4, %s31
        %s419 = smul.u32 4, %s31
        %s420 = smul.u32 4, %s31
        %p421 = scmp.lt.s32.totalorder %s30, 1
        %s422 = scalar_select %p421, %s30, 1
        %p423 = scmp.lt.s32.totalorder %s420, 3
        %s424 = scalar_select %p423, %s420, 3
        %s425 = smul.addr %s422, 8
        %s426 = sadd.s32 %s424, %s425
        %s427 = smul.addr %s426, 4
        %s428 = scalar_lea.vmem %s6, %s427
        %s429 = smul.u32 4, %s31
        %s430 = smul.u32 4, %s31
        %p431 = scmp.lt.s32.totalorder %s30, 1
        %s432 = scalar_select %p431, %s30, 1
        %p433 = scmp.lt.s32.totalorder %s430, 3
        %s434 = scalar_select %p433, %s430, 3
        %s435 = smul.addr %s432, 8
        %s436 = sadd.s32 %s434, %s435
        %s437 = smul.addr %s436, 4
        %s438 = scalar_lea.vmem %s7, %s437
        %s439 = smul.u32 4, %s31
        %s440 = smul.u32 4, %s31
        %p441 = scmp.lt.s32.totalorder %s30, 1
        %s442 = scalar_select %p441, %s30, 1
        %p443 = scmp.lt.s32.totalorder %s440, 3
        %s444 = scalar_select %p443, %s440, 3
        %s445 = smul.addr %s442, 8
        %s446 = sadd.s32 %s444, %s445
        %s447 = smul.addr %s446, 4
        %s448 = scalar_lea.vmem %s8, %s447
        %s449 = smul.u32 4, %s31
        %v451 = vld [vmem:[%s347] sm:$0xff]
        %v452 = vld [vmem:[%s347 + $0x8] sm:$0xff]
        %v453 = vld [vmem:[%s347 + $0x10] sm:$0xff]
        %v454 = vld [vmem:[%s347 + $0x18] sm:$0xff]
        %v455 = vpack.c.bf16 %v452, %v451
        %v456 = vpack.c.bf16 %v454, %v453
        %v457 = vld [vmem:[%s357] sm:$0xff]
        %v458 = vld [vmem:[%s357 + $0x8] sm:$0xff]
        %v459 = vld [vmem:[%s357 + $0x10] sm:$0xff]
        %v460 = vld [vmem:[%s357 + $0x18] sm:$0xff]
        %v461 = vpack.c.bf16 %v458, %v457
        %v462 = vpack.c.bf16 %v460, %v459
        %v463 = vld [vmem:[%s2] sm:$0xf]
        %v464 = vld [vmem:[%s2 + $0x4] sm:$0xf]
        %v465 = vld [vmem:[%s2 + $0x8] sm:$0xf]
        %v466 = vld [vmem:[%s2 + $0xc] sm:$0xf]
        %v467 = vld [vmem:[%s5] sm:$0x1]
        %v468 = vperm.slane %v467, 0
        %v473 = vunpack.c.l.b16 %v463
        %v474 = vunpack.c.l.b16 %v464
        %v475 = vunpack.c.l.b16 %v465
        %v476 = vunpack.c.l.b16 %v466
        %v477 = vpack.c.b16 %v474, %v473
        %v478 = vpack.c.b16 %v476, %v475
        %vm481 = vcmask 261120
        %v483 = vsel %vm481, %v455, 0
        %v486 = vsel %vm481, %v456, 0
        %488 = vmatpush.bf16.msra.mxu0 0
        %489 = vmatpush.bf16.msra.mxu0 0
        %490 = vmatpush.bf16.msra.mxu0 0
        %491 = vmatpush.bf16.msra.mxu0 0
        %492 = vmatpush.bf16.msra.mxu0 0
        %493 = vmatpush.bf16.msra.mxu0 0
        %494 = vmatpush.bf16.msra.mxu0 %v478
        %495 = vmatpush.bf16.msra.mxu0 %v477
        %496 = vmatmul.bf16.gmra.mxu0 %v483
        %v497 = vpop.f32.mrf.mxu0
        %v498 = vadd.f32 %v468, %v497
        %v499 = vpop.f32.mrf.mxu0
        %v500 = vadd.f32 %v468, %v499
        %501 = vmatmul.bf16.gmra.mxu0 %v486
        %v502 = vpop.f32.mrf.mxu0
        %v503 = vadd.f32 %v468, %v502
        %v504 = vpop.f32.mrf.mxu0
        %v505 = vadd.f32 %v468, %v504
        %506 = vdwg.mxu0
        %v507 = vmul.f32 %v498, 0.35355338
        %v508 = vmul.f32 %v500, 0.35355338
        %v509 = vmul.f32 %v503, 0.35355338
        %v510 = vmul.f32 %v505, 0.35355338
        %v511 = vld [vmem:[%s3] sm:$0xf]
        %v512 = vld [vmem:[%s3 + $0x4] sm:$0xf]
        %v513 = vld [vmem:[%s3 + $0x8] sm:$0xf]
        %v514 = vld [vmem:[%s3 + $0xc] sm:$0xf]
        %v515 = vld [vmem:[%s5 + $0x1] sm:$0x1]
        %v516 = vperm.slane %v515, 0
        %v521 = vunpack.c.l.b16 %v511
        %v522 = vunpack.c.l.b16 %v512
        %v523 = vunpack.c.l.b16 %v513
        %v524 = vunpack.c.l.b16 %v514
        %v525 = vpack.c.b16 %v522, %v521
        %v526 = vpack.c.b16 %v524, %v523
        %529 = vmatpush.bf16.msra.mxu0 0
        %530 = vmatpush.bf16.msra.mxu0 0
        %531 = vmatpush.bf16.msra.mxu0 0
        %532 = vmatpush.bf16.msra.mxu0 0
        %533 = vmatpush.bf16.msra.mxu0 0
        %534 = vmatpush.bf16.msra.mxu0 0
        %535 = vmatpush.bf16.msra.mxu0 %v526
        %536 = vmatpush.bf16.msra.mxu0 %v525
        %537 = vmatmul.bf16.gmra.mxu0 %v483
        %v538 = vpop.f32.mrf.mxu0
        %v539 = vadd.f32 %v516, %v538
        %v540 = vpop.f32.mrf.mxu0
        %v541 = vadd.f32 %v516, %v540
        %542 = vmatmul.bf16.gmra.mxu0 %v486
        %v543 = vpop.f32.mrf.mxu0
        %v544 = vadd.f32 %v516, %v543
        %v545 = vpop.f32.mrf.mxu0
        %v546 = vadd.f32 %v516, %v545
        %547 = vdwg.mxu0
        %v548 = vld [vmem:[%s4] sm:$0xf]
        %v549 = vld [vmem:[%s4 + $0x4] sm:$0xf]
        %v550 = vld [vmem:[%s4 + $0x8] sm:$0xf]
        %v551 = vld [vmem:[%s4 + $0xc] sm:$0xf]
        %v552 = vld [vmem:[%s5 + $0x2] sm:$0x1]
        %v553 = vperm.slane %v552, 0
        %v558 = vunpack.c.l.b16 %v548
        %v559 = vunpack.c.l.b16 %v549
        %v560 = vunpack.c.l.b16 %v550
        %v561 = vunpack.c.l.b16 %v551
        %v562 = vpack.c.b16 %v559, %v558
        %v563 = vpack.c.b16 %v561, %v560
        %v567 = vsel %vm481, %v461, 0
        %v570 = vsel %vm481, %v462, 0
        %572 = vmatpush.bf16.msra.mxu0 0
        %573 = vmatpush.bf16.msra.mxu0 0
        %574 = vmatpush.bf16.msra.mxu0 0
        %575 = vmatpush.bf16.msra.mxu0 0
        %576 = vmatpush.bf16.msra.mxu0 0
        %577 = vmatpush.bf16.msra.mxu0 0
        %578 = vmatpush.bf16.msra.mxu0 %v563
        %579 = vmatpush.bf16.msra.mxu0 %v562
        %580 = vmatmul.bf16.gmra.mxu0 %v567
        %v581 = vpop.f32.mrf.mxu0
        %v582 = vadd.f32 %v553, %v581
        %v583 = vpop.f32.mrf.mxu0
        %v584 = vadd.f32 %v553, %v583
        %585 = vmatmul.bf16.gmra.mxu0 %v570
        %v586 = vpop.f32.mrf.mxu0
        %v587 = vadd.f32 %v553, %v586
        %v588 = vpop.f32.mrf.mxu0
        %v589 = vadd.f32 %v553, %v588
        %590 = vdwg.mxu0
        %v591 = vpack.c.bf16 %v507, %v507
        %v592 = vpack.c.bf16 %v508, %v508
        %v593 = vpack.c.bf16 %v509, %v509
        %v594 = vpack.c.bf16 %v510, %v510
        %vm595 = vcmask 60416
        %596 = vst.msk [vmem:[%s428] sm:$0xf] %vm595, %v591
        %597 = vst.msk [vmem:[%s428 + $0x4] sm:$0xf] %vm595, %v592
        %598 = vst.msk [vmem:[%s428 + $0x8] sm:$0xf] %vm595, %v593
        %599 = vst.msk [vmem:[%s428 + $0xc] sm:$0xf] %vm595, %v594
        %v600 = vpack.c.bf16 %v539, %v539
        %v601 = vpack.c.bf16 %v541, %v541
        %v602 = vpack.c.bf16 %v544, %v544
        %v603 = vpack.c.bf16 %v546, %v546
        %604 = vst.msk [vmem:[%s438] sm:$0xf] %vm595, %v600
        %605 = vst.msk [vmem:[%s438 + $0x4] sm:$0xf] %vm595, %v601
        %606 = vst.msk [vmem:[%s438 + $0x8] sm:$0xf] %vm595, %v602
        %607 = vst.msk [vmem:[%s438 + $0xc] sm:$0xf] %vm595, %v603
        %v608 = vpack.c.bf16 %v582, %v582
        %v609 = vpack.c.bf16 %v584, %v584
        %v610 = vpack.c.bf16 %v587, %v587
        %v611 = vpack.c.bf16 %v589, %v589
        %612 = vst.msk [vmem:[%s448] sm:$0xf] %vm595, %v608
        %613 = vst.msk [vmem:[%s448 + $0x4] sm:$0xf] %vm595, %v609
        %614 = vst.msk [vmem:[%s448 + $0x8] sm:$0xf] %vm595, %v610
        %615 = vst.msk [vmem:[%s448 + $0xc] sm:$0xf] %vm595, %v611
        %620 = vrot.lane.b32.xlu0 %v591, 120
        %v621 = vpop.permute.xlu0 %620
        %622 = vrot.lane.b32.xlu0 %v592, 120
        %v623 = vpop.permute.xlu0 %622
        %624 = vrot.lane.b32.xlu0 %v593, 120
        %v625 = vpop.permute.xlu0 %624
        %626 = vrot.lane.b32.xlu0 %v594, 120
        %v627 = vpop.permute.xlu0 %626
        %s632 = scalar_lea.vmem %s428, 16
        %633 = vst.msk [vmem:[%s632] sm:$0xf] %vm595, %v621
        %634 = vst.msk [vmem:[%s632 + $0x4] sm:$0xf] %vm595, %v623
        %635 = vst.msk [vmem:[%s632 + $0x8] sm:$0xf] %vm595, %v625
        %636 = vst.msk [vmem:[%s632 + $0xc] sm:$0xf] %vm595, %v627
        %641 = vrot.lane.b32.xlu0 %v600, 120
        %v642 = vpop.permute.xlu0 %641
        %643 = vrot.lane.b32.xlu0 %v601, 120
        %v644 = vpop.permute.xlu0 %643
        %645 = vrot.lane.b32.xlu0 %v602, 120
        %v646 = vpop.permute.xlu0 %645
        %647 = vrot.lane.b32.xlu0 %v603, 120
        %v648 = vpop.permute.xlu0 %647
        %s653 = scalar_lea.vmem %s438, 16
        %654 = vst.msk [vmem:[%s653] sm:$0xf] %vm595, %v642
        %655 = vst.msk [vmem:[%s653 + $0x4] sm:$0xf] %vm595, %v644
        %656 = vst.msk [vmem:[%s653 + $0x8] sm:$0xf] %vm595, %v646
        %657 = vst.msk [vmem:[%s653 + $0xc] sm:$0xf] %vm595, %v648
        %662 = vrot.lane.b32.xlu0 %v608, 120
        %v663 = vpop.permute.xlu0 %662
        %664 = vrot.lane.b32.xlu0 %v609, 120
        %v665 = vpop.permute.xlu0 %664
        %666 = vrot.lane.b32.xlu0 %v610, 120
        %v667 = vpop.permute.xlu0 %666
        %668 = vrot.lane.b32.xlu0 %v611, 120
        %v669 = vpop.permute.xlu0 %668
        %s674 = scalar_lea.vmem %s448, 16
        %675 = vst.msk [vmem:[%s674] sm:$0xf] %vm595, %v663
        %676 = vst.msk [vmem:[%s674 + $0x4] sm:$0xf] %vm595, %v665
        %677 = vst.msk [vmem:[%s674 + $0x8] sm:$0xf] %vm595, %v667
        %678 = vst.msk [vmem:[%s674 + $0xc] sm:$0xf] %vm595, %v669
        %s679 = smul.u32 4, %s31
        %p680 = scmp.lt.s32.totalorder %s30, 1
        %s681 = scalar_select %p680, %s30, 1
        %p682 = scmp.lt.s32.totalorder %s679, 3
        %s683 = scalar_select %p682, %s679, 3
        %s684 = smul.addr %s681, 8
        %s685 = sadd.s32 %s683, %s684
        %s686 = smul.addr %s685, 4
        %s687 = scalar_lea.vmem %s6, %s686
        %s688 = smul.u32 4, %s31
        %p689 = scmp.lt.s32.totalorder %s30, 1
        %s690 = scalar_select %p689, %s30, 1
        %p691 = scmp.lt.s32.totalorder %s688, 3
        %s692 = scalar_select %p691, %s688, 3
        %s693 = smul.addr %s690, 8
        %s694 = sadd.s32 %s692, %s693
        %s695 = smul.addr %s694, 4
        %s696 = scalar_lea.vmem %s7, %s695
        %s697 = smul.u32 4, %s31
        %p698 = scmp.lt.s32.totalorder %s30, 1
        %s699 = scalar_select %p698, %s30, 1
        %p700 = scmp.lt.s32.totalorder %s697, 3
        %s701 = scalar_select %p700, %s697, 3
        %s702 = smul.addr %s699, 8
        %s703 = sadd.s32 %s701, %s702
        %s704 = smul.addr %s703, 4
        %s705 = scalar_lea.vmem %s8, %s704
        // Predicated region
        $region53: #{tpu_custom_call.1} parent=43 // pred_check
          %p706 = pneg %p198
        $region54: #{tpu_custom_call.1} parent=43 // pred_check_branch
          %708 = sbr.rel (%p706) target = $region56
        $region55: #{tpu_custom_call.1} parent=43 // pred_region
          %s709 = smul.u32 4, %s31
        $region56: #{tpu_custom_call.1} parent=43 // pred_fallthru
          _
        // Predicated region
        $region57: #{tpu_custom_call.1} parent=43 // pred_check
          %p710 = pneg %p226
        $region58: #{tpu_custom_call.1} parent=43 // pred_check_branch
          %712 = sbr.rel (%p710) target = $region60
        $region59: #{tpu_custom_call.1} parent=43 // pred_region
          %s713 = smul.u32 4, %s31
        $region60: #{tpu_custom_call.1} parent=43 // pred_fallthru
          _
        // Predicated region
        $region61: #{tpu_custom_call.1} parent=43 // pred_check
          %p714 = pneg %p254
        $region62: #{tpu_custom_call.1} parent=43 // pred_check_branch
          %716 = sbr.rel (%p714) target = $region64
        $region63: #{tpu_custom_call.1} parent=43 // pred_region
          %s717 = smul.u32 4, %s31
        $region64: #{tpu_custom_call.1} parent=43 // pred_fallthru
          _
      $region44: #{tpu_custom_call.1} parent=5 // pred_fallthru
        _
      %p718 = scmp.le.s32.totalorder 2, %s21
      // Predicated region
      $region65: #{tpu_custom_call.1} parent=5 // pred_check
        %p719 = pneg %p718
      $region66: #{tpu_custom_call.1} parent=5 // pred_check_branch
        %721 = sbr.rel (%p719) target = $region68
      $region67: #{tpu_custom_call.1} parent=5 // pred_region
        %s722 = ssub.s32 %s21, 2
        // Predicated region
        $region69: #{tpu_custom_call.1} parent=67 // pred_check
          %p723 = pneg %p204
        $region70: #{tpu_custom_call.1} parent=67 // pred_check_branch
          %725 = sbr.rel (%p723) target = $region72
        $region71: #{tpu_custom_call.1} parent=67 // pred_region
          %s726 = smul.u32 4, %s33
          %p727 = scmp.lt.s32.totalorder %s32, 1
          %s728 = scalar_select %p727, %s32, 1
          %p729 = scmp.lt.s32.totalorder %s726, 3
          %s730 = scalar_select %p729, %s726, 3
          %s731 = smul.addr %s728, 8
          %s732 = sadd.s32 %s730, %s731
          %s733 = smul.addr %s732, 4
          %s734 = scalar_lea.vmem %s6, %s733
        $region72: #{tpu_custom_call.1} parent=67 // pred_fallthru
          _
        // Predicated region
        $region73: #{tpu_custom_call.1} parent=67 // pred_check
          %p735 = pneg %p232
        $region74: #{tpu_custom_call.1} parent=67 // pred_check_branch
          %737 = sbr.rel (%p735) target = $region76
        $region75: #{tpu_custom_call.1} parent=67 // pred_region
          %s738 = smul.u32 4, %s33
          %p739 = scmp.lt.s32.totalorder %s32, 1
          %s740 = scalar_select %p739, %s32, 1
          %p741 = scmp.lt.s32.totalorder %s738, 3
          %s742 = scalar_select %p741, %s738, 3
          %s743 = smul.addr %s740, 8
          %s744 = sadd.s32 %s742, %s743
          %s745 = smul.addr %s744, 4
          %s746 = scalar_lea.vmem %s7, %s745
        $region76: #{tpu_custom_call.1} parent=67 // pred_fallthru
          _
        // Predicated region
        $region77: #{tpu_custom_call.1} parent=67 // pred_check
          %p747 = pneg %p260
        $region78: #{tpu_custom_call.1} parent=67 // pred_check_branch
          %749 = sbr.rel (%p747) target = $region80
        $region79: #{tpu_custom_call.1} parent=67 // pred_region
          %s750 = smul.u32 4, %s33
          %p751 = scmp.lt.s32.totalorder %s32, 1
          %s752 = scalar_select %p751, %s32, 1
          %p753 = scmp.lt.s32.totalorder %s750, 3
          %s754 = scalar_select %p753, %s750, 3
          %s755 = smul.addr %s752, 8
          %s756 = sadd.s32 %s754, %s755
          %s757 = smul.addr %s756, 4
          %s758 = scalar_lea.vmem %s8, %s757
        $region80: #{tpu_custom_call.1} parent=67 // pred_fallthru
          _
      $region68: #{tpu_custom_call.1} parent=5 // pred_fallthru
        _
    $region6: #{tpu_custom_call.1} parent=1 // loop_footer
      %s25 = sadd.s32 1, %s21
    $region7: #{tpu_custom_call.1} parent=1 // loop_footer_branch
      %20 = sbr.rel target = $region3
    $region8: #{tpu_custom_call.1} parent=1 // loop_exit
      _
    %759 = vsyncpa [#allocation3], 1
    %s760 = scalar_lea.sflag [#allocation3], 1
    %761 = vsyncpa %s760, 1
    %762 = vsyncpa [#allocation5], 1
    %s763 = scalar_lea.sflag [#allocation5], 1
    %764 = vsyncpa %s763, 1

</llo_original>
